<compile_context>
chip_gen: v5e
topology: v5e:2x2
jax: 0.10.0
libtpu: 0.0.40
codegen_flags: <defaults>
</compile_context>

<pallas_src>
import functools

import jax
import jax.numpy as jnp
from jax.experimental import pallas as pl
from jax.experimental.pallas import tpu as pltpu


_HIDDEN = (128, 96, 64, 45)   # true layer widths from the PyTorch module
_LANE = 128


def _round_up(x, m):
    return ((x + m - 1) // m) * m


def _cdiv(a, b):
    return -(-a // b)


def _mlp_kernel(x_ref, w1_ref, b1_ref, w2_ref, b2_ref,
                w3_ref, b3_ref, w4_ref, b4_ref, o_ref):
    """4 x (matmul + bias + ReLU) on one row tile; hidden widths lane-dense."""
    cdt = w1_ref.dtype  # bf16 (or f32 if use_bf16=False)

    # linear(atom_type_in -> 128) + ReLU   (K = true atom_type_in; MXU pads K)
    h = jnp.dot(x_ref[...], w1_ref[...], preferred_element_type=jnp.float32)
    h = jnp.maximum(h + b1_ref[...], 0.0)
    # linear2(128 -> 96, padded to 128) + ReLU
    h = jnp.dot(h.astype(cdt), w2_ref[...], preferred_element_type=jnp.float32)
    h = jnp.maximum(h + b2_ref[...], 0.0)
    # linear3(96 -> 64, padded to 128) + ReLU
    h = jnp.dot(h.astype(cdt), w3_ref[...], preferred_element_type=jnp.float32)
    h = jnp.maximum(h + b3_ref[...], 0.0)
    # linear4(64 -> 45, padded to 128) + ReLU
    h = jnp.dot(h.astype(cdt), w4_ref[...], preferred_element_type=jnp.float32)
    h = jnp.maximum(h + b4_ref[...], 0.0)

    o_ref[...] = h.astype(o_ref.dtype)   # lane-dense (tile, 128) bf16 store


def _choose_tiling(n, tile_m):
    """Row tile (multiple of 256) + padded row count.

    Tile is capped at tile_m; when N is large enough the grid is forced to
    have >= 2 steps so both v7x TensorCores get work.
    """
    tile_cfg = max(256, _round_up(tile_m, 256))
    n_steps = max(1, _cdiv(n, tile_cfg))
    if n > 512:
        n_steps = max(n_steps, 2)
    tile = min(tile_cfg, _round_up(_cdiv(n, n_steps), 256))
    n_pad = tile * n_steps
    return tile, n_pad


@functools.partial(jax.jit, static_argnames=("tile_m", "use_bf16"))
def atom_embedding_forward(x, params, batch=None, *, tile_m=2048, use_bf16=True):
    """Pallas implementation of AtomEmbeddingAndSumLastLayer.forward.

    x: [N, atom_type_in] float32 (any N, any atom_type_in)
    params: dict of w1..w4 ([in, out]) and b1..b4 ([1, out]), PyTorch widths.
    """
    N, d_in = x.shape
    d_out = params["w4"].shape[1]  # 45
    compute_dtype = jnp.bfloat16 if use_bf16 else x.dtype

    # x keeps its TRUE feature width; hidden widths lane-padded to 128 so every
    # intermediate matmul / bias add / store is full-vreg and unmasked.
    widths = [d_in] + [_round_up(w, _LANE) for w in _HIDDEN]

    padded = []
    for i in range(1, 5):
        w = params[f"w{i}"]
        b = params[f"b{i}"]
        in_p, out_p = widths[i - 1], widths[i]
        w_p = (jnp.zeros((in_p, out_p), compute_dtype)
               .at[:w.shape[0], :w.shape[1]].set(w.astype(compute_dtype)))
        b_p = (jnp.zeros((1, out_p), jnp.float32)
               .at[:, :b.shape[1]].set(b.astype(jnp.float32)))
        padded.append(w_p)   # compute-dtype matmul operand
        padded.append(b_p)   # f32 bias (VPU add in f32; v5e-friendly)

    # ---- row tiling: large tiles, >=2 grid steps when N is big enough ------
    tile, n_pad = _choose_tiling(N, tile_m)

    # Row pad + dtype cast as ONE fused op (no separate pad-then-cast passes).
    x_p = (jnp.zeros((n_pad, d_in), compute_dtype)
           .at[:N, :].set(x.astype(compute_dtype)))

    grid = (n_pad // tile,)

    def whole(arr):
        # Full-array block, constant block index: fetched once, VMEM-resident.
        nd = arr.ndim
        return pl.BlockSpec(arr.shape, lambda i: (0,) * nd)

    out = pl.pallas_call(
        _mlp_kernel,
        out_shape=jax.ShapeDtypeStruct((n_pad, widths[-1]), compute_dtype),
        grid_spec=pltpu.PrefetchScalarGridSpec(
            num_scalar_prefetch=0,
            grid=grid,
            in_specs=[pl.BlockSpec((tile, d_in), lambda i: (i, 0))]
                     + [whole(a) for a in padded],
            out_specs=pl.BlockSpec((tile, widths[-1]), lambda i: (i, 0)),
        ),
        compiler_params=pltpu.CompilerParams(
            dimension_semantics=("parallel",),
            vmem_limit_bytes=16 * 1024 * 1024,
        ),
    )(x_p, *padded)

    # Slice padded rows/cols back to [N, 45]; jit fuses this with the graph.
    output = out[:N, :d_out].astype(x.dtype)

    # TODO(synk): `self.model` (external graph readout over {'x','batch'})
    # applied as identity; print() side effects omitted.

    # Mirrors `if batch is None: batch = output.new_ones(N)` (unused after).
    if batch is None:
        batch = jnp.ones((output.shape[0],), dtype=output.dtype)

    return output


def init_params(key, atom_type_in):
    """Deterministic init matching the Linear shapes in __init__ (w: [in, out])."""
    dims = [(atom_type_in, 128), (128, 96), (96, 64), (64, 45)]
    params = {}
    for idx, (fan_in, fan_out) in enumerate(dims, start=1):
        key, kw, kb = jax.random.split(key, 3)
        bound = 1.0 / (fan_in ** 0.5)
        params[f"w{idx}"] = jax.random.uniform(
            kw, (fan_in, fan_out), jnp.float32, -bound, bound)
        params[f"b{idx}"] = jax.random.uniform(
            kb, (1, fan_out), jnp.float32, -bound, bound)
    return params


def _reference_forward(x, params, use_bf16=True):
    """Plain-JAX reference with the same numerics (bf16 matmul, f32 bias/ReLU,
    bf16 final store)."""
    cdt = jnp.bfloat16 if use_bf16 else x.dtype
    h = x
    for i in range(1, 5):
        w = params[f"w{i}"].astype(cdt)
        b = params[f"b{i}"].astype(jnp.float32)
        y = jnp.dot(h.astype(cdt), w, preferred_element_type=jnp.float32)
        h = jnp.maximum(y + b, 0.0)
    # Kernel stores its output in the compute dtype; mirror that rounding.
    return h.astype(cdt).astype(x.dtype)


if __name__ == "__main__":
    key = jax.random.PRNGKey(0)
    k_x, k_p = jax.random.split(key)

    # Small synthetic shapes; non-multiples exercise padding, and N > 512
    # exercises the multi-step (dual-TensorCore) grid path.
    N, atom_type_in = 600, 27
    x = jax.random.normal(k_x, (N, atom_type_in), jnp.float32)
    params = init_params(k_p, atom_type_in)

    out = atom_embedding_forward(x, params, batch=None)
    out = jax.block_until_ready(out)

    ref = _reference_forward(x, params)
    assert out.shape == (N, 45), out.shape
    assert jnp.allclose(out, ref, atol=1e-2, rtol=1e-2), \
        float(jnp.max(jnp.abs(out - ref)))

    print("KERNEL_OK")
</pallas_src>

<mosaic_0001>
module attributes {stable_mosaic.version = 11 : i64} {
  func.func @_mlp_kernel(%arg0: i32, %arg1: memref<512x27xbf16, #tpu.memory_space<vmem>>, %arg2: memref<27x128xbf16, #tpu.memory_space<vmem>>, %arg3: memref<1x128xf32, #tpu.memory_space<vmem>>, %arg4: memref<128x128xbf16, #tpu.memory_space<vmem>>, %arg5: memref<1x128xf32, #tpu.memory_space<vmem>>, %arg6: memref<128x128xbf16, #tpu.memory_space<vmem>>, %arg7: memref<1x128xf32, #tpu.memory_space<vmem>>, %arg8: memref<128x128xbf16, #tpu.memory_space<vmem>>, %arg9: memref<1x128xf32, #tpu.memory_space<vmem>>, %arg10: memref<512x128xbf16, #tpu.memory_space<vmem>>) attributes {dimension_semantics = [#tpu.dimension_semantics<parallel>], iteration_bounds = array<i64: 2>, scalar_prefetch = 0 : i64, scratch_operands = 0 : i64, tpu.core_type = #tpu.core_type<tc>, window_params = [{transform_indices = @transform_0, window_bounds = array<i64: 512, 27>}, {pipeline_mode = #tpu.pipeline_mode<synchronous>, transform_indices = @transform_1, window_bounds = array<i64: 27, 128>}, {pipeline_mode = #tpu.pipeline_mode<synchronous>, transform_indices = @transform_2, window_bounds = array<i64: 1, 128>}, {pipeline_mode = #tpu.pipeline_mode<synchronous>, transform_indices = @transform_3, window_bounds = array<i64: 128, 128>}, {pipeline_mode = #tpu.pipeline_mode<synchronous>, transform_indices = @transform_4, window_bounds = array<i64: 1, 128>}, {pipeline_mode = #tpu.pipeline_mode<synchronous>, transform_indices = @transform_5, window_bounds = array<i64: 128, 128>}, {pipeline_mode = #tpu.pipeline_mode<synchronous>, transform_indices = @transform_6, window_bounds = array<i64: 1, 128>}, {pipeline_mode = #tpu.pipeline_mode<synchronous>, transform_indices = @transform_7, window_bounds = array<i64: 128, 128>}, {pipeline_mode = #tpu.pipeline_mode<synchronous>, transform_indices = @transform_8, window_bounds = array<i64: 1, 128>}, {transform_indices = @transform_9, window_bounds = array<i64: 512, 128>}]} {
    %c0 = arith.constant 0 : index
    %c0_0 = arith.constant 0 : index
    %0 = vector.load %arg1[%c0, %c0_0] : memref<512x27xbf16, #tpu.memory_space<vmem>>, vector<512x27xbf16>
    %c0_1 = arith.constant 0 : index
    %c0_2 = arith.constant 0 : index
    %1 = vector.load %arg2[%c0_1, %c0_2] : memref<27x128xbf16, #tpu.memory_space<vmem>>, vector<27x128xbf16>
    %cst = arith.constant dense<0.000000e+00> : vector<512x128xf32>
    %2 = tpu.matmul %0, %1, %cst {dimension_numbers = #tpu.dot_dimension_numbers<[1], [0], [0], [1], [0, 0, 1, 1], [], []>} : vector<512x27xbf16>, vector<27x128xbf16>, vector<512x128xf32> -> vector<512x128xf32>
    %c0_3 = arith.constant 0 : index
    %c0_4 = arith.constant 0 : index
    %3 = vector.load %arg3[%c0_3, %c0_4] : memref<1x128xf32, #tpu.memory_space<vmem>>, vector<1x128xf32>
    %4 = vector.broadcast %3 : vector<1x128xf32> to vector<512x128xf32>
    %5 = arith.addf %2, %4 : vector<512x128xf32>
    %cst_5 = arith.constant 0.000000e+00 : f32
    %6 = vector.broadcast %cst_5 : f32 to vector<512x128xf32>
    %7 = arith.maximumf %5, %6 : vector<512x128xf32>
    %8 = arith.truncf %7 : vector<512x128xf32> to vector<512x128xbf16>
    %c0_6 = arith.constant 0 : index
    %c0_7 = arith.constant 0 : index
    %9 = vector.load %arg4[%c0_6, %c0_7] : memref<128x128xbf16, #tpu.memory_space<vmem>>, vector<128x128xbf16>
    %cst_8 = arith.constant dense<0.000000e+00> : vector<512x128xf32>
    %10 = tpu.matmul %8, %9, %cst_8 {dimension_numbers = #tpu.dot_dimension_numbers<[1], [0], [0], [1], [0, 0, 1, 1], [], []>} : vector<512x128xbf16>, vector<128x128xbf16>, vector<512x128xf32> -> vector<512x128xf32>
    %c0_9 = arith.constant 0 : index
    %c0_10 = arith.constant 0 : index
    %11 = vector.load %arg5[%c0_9, %c0_10] : memref<1x128xf32, #tpu.memory_space<vmem>>, vector<1x128xf32>
    %12 = vector.broadcast %11 : vector<1x128xf32> to vector<512x128xf32>
    %13 = arith.addf %10, %12 : vector<512x128xf32>
    %cst_11 = arith.constant 0.000000e+00 : f32
    %14 = vector.broadcast %cst_11 : f32 to vector<512x128xf32>
    %15 = arith.maximumf %13, %14 : vector<512x128xf32>
    %16 = arith.truncf %15 : vector<512x128xf32> to vector<512x128xbf16>
    %c0_12 = arith.constant 0 : index
    %c0_13 = arith.constant 0 : index
    %17 = vector.load %arg6[%c0_12, %c0_13] : memref<128x128xbf16, #tpu.memory_space<vmem>>, vector<128x128xbf16>
    %cst_14 = arith.constant dense<0.000000e+00> : vector<512x128xf32>
    %18 = tpu.matmul %16, %17, %cst_14 {dimension_numbers = #tpu.dot_dimension_numbers<[1], [0], [0], [1], [0, 0, 1, 1], [], []>} : vector<512x128xbf16>, vector<128x128xbf16>, vector<512x128xf32> -> vector<512x128xf32>
    %c0_15 = arith.constant 0 : index
    %c0_16 = arith.constant 0 : index
    %19 = vector.load %arg7[%c0_15, %c0_16] : memref<1x128xf32, #tpu.memory_space<vmem>>, vector<1x128xf32>
    %20 = vector.broadcast %19 : vector<1x128xf32> to vector<512x128xf32>
    %21 = arith.addf %18, %20 : vector<512x128xf32>
    %cst_17 = arith.constant 0.000000e+00 : f32
    %22 = vector.broadcast %cst_17 : f32 to vector<512x128xf32>
    %23 = arith.maximumf %21, %22 : vector<512x128xf32>
    %24 = arith.truncf %23 : vector<512x128xf32> to vector<512x128xbf16>
    %c0_18 = arith.constant 0 : index
    %c0_19 = arith.constant 0 : index
    %25 = vector.load %arg8[%c0_18, %c0_19] : memref<128x128xbf16, #tpu.memory_space<vmem>>, vector<128x128xbf16>
    %cst_20 = arith.constant dense<0.000000e+00> : vector<512x128xf32>
    %26 = tpu.matmul %24, %25, %cst_20 {dimension_numbers = #tpu.dot_dimension_numbers<[1], [0], [0], [1], [0, 0, 1, 1], [], []>} : vector<512x128xbf16>, vector<128x128xbf16>, vector<512x128xf32> -> vector<512x128xf32>
    %c0_21 = arith.constant 0 : index
    %c0_22 = arith.constant 0 : index
    %27 = vector.load %arg9[%c0_21, %c0_22] : memref<1x128xf32, #tpu.memory_space<vmem>>, vector<1x128xf32>
    %28 = vector.broadcast %27 : vector<1x128xf32> to vector<512x128xf32>
    %29 = arith.addf %26, %28 : vector<512x128xf32>
    %cst_23 = arith.constant 0.000000e+00 : f32
    %30 = vector.broadcast %cst_23 : f32 to vector<512x128xf32>
    %31 = arith.maximumf %29, %30 : vector<512x128xf32>
    %32 = arith.truncf %31 : vector<512x128xf32> to vector<512x128xbf16>
    %c0_24 = arith.constant 0 : index
    %c0_25 = arith.constant 0 : index
    %33 = vector.load %arg10[%c0_24, %c0_25] : memref<512x128xbf16, #tpu.memory_space<vmem>>, vector<512x128xbf16>
    tpu.vector_store %arg10[%c0_24, %c0_25], %32 {strides = array<i32>} : memref<512x128xbf16, #tpu.memory_space<vmem>>, vector<512x128xbf16>,
    return
  }
  func.func @transform_0(%arg0: i32) -> (i32, i32) {
    %c0_i32 = arith.constant 0 : i32
    %c0_i32_0 = arith.constant 0 : i32
    return %arg0, %c0_i32 : i32, i32
  }
  func.func @transform_1(%arg0: i32) -> (i32, i32) {
    %c0_i32 = arith.constant 0 : i32
    %c0_i32_0 = arith.constant 0 : i32
    %c0_i32_1 = arith.constant 0 : i32
    return %c0_i32, %c0_i32_0 : i32, i32
  }
  func.func @transform_2(%arg0: i32) -> (i32, i32) {
    %c0_i32 = arith.constant 0 : i32
    %c0_i32_0 = arith.constant 0 : i32
    %c0_i32_1 = arith.constant 0 : i32
    return %c0_i32, %c0_i32_0 : i32, i32
  }
  func.func @transform_3(%arg0: i32) -> (i32, i32) {
    %c0_i32 = arith.constant 0 : i32
    %c0_i32_0 = arith.constant 0 : i32
    %c0_i32_1 = arith.constant 0 : i32
    return %c0_i32, %c0_i32_0 : i32, i32
  }
  func.func @transform_4(%arg0: i32) -> (i32, i32) {
    %c0_i32 = arith.constant 0 : i32
    %c0_i32_0 = arith.constant 0 : i32
    %c0_i32_1 = arith.constant 0 : i32
    return %c0_i32, %c0_i32_0 : i32, i32
  }
  func.func @transform_5(%arg0: i32) -> (i32, i32) {
    %c0_i32 = arith.constant 0 : i32
    %c0_i32_0 = arith.constant 0 : i32
    %c0_i32_1 = arith.constant 0 : i32
    return %c0_i32, %c0_i32_0 : i32, i32
  }
  func.func @transform_6(%arg0: i32) -> (i32, i32) {
    %c0_i32 = arith.constant 0 : i32
    %c0_i32_0 = arith.constant 0 : i32
    %c0_i32_1 = arith.constant 0 : i32
    return %c0_i32, %c0_i32_0 : i32, i32
  }
  func.func @transform_7(%arg0: i32) -> (i32, i32) {
    %c0_i32 = arith.constant 0 : i32
    %c0_i32_0 = arith.constant 0 : i32
    %c0_i32_1 = arith.constant 0 : i32
    return %c0_i32, %c0_i32_0 : i32, i32
  }
  func.func @transform_8(%arg0: i32) -> (i32, i32) {
    %c0_i32 = arith.constant 0 : i32
    %c0_i32_0 = arith.constant 0 : i32
    %c0_i32_1 = arith.constant 0 : i32
    return %c0_i32, %c0_i32_0 : i32, i32
  }
  func.func @transform_9(%arg0: i32) -> (i32, i32) {
    %c0_i32 = arith.constant 0 : i32
    %c0_i32_0 = arith.constant 0 : i32
    return %arg0, %c0_i32 : i32, i32
  }
}

</mosaic_0001>

<llo_original>
// kernel: atom_embedding_forward.1
$region0: #{atom_embedding_forward.1}
  #allocation0 [shape = 'u32[]', space=smem, size = 0x4, offset = 0x4, fixed_abs, tag = 'smem constant byte address 0x4 - core index']
  #allocation1 [shape = 'u32[72,128]{1,0:T(1,128)}', space=vmem, size = 0x9000, scoped, tag = 'internal scratch']
  %s0 = inlined_call_operand.vmem [shape: bf16[1024,27], index: 0, kind: input, shape index: {}]
  %s1 = inlined_call_operand.vmem [shape: bf16[27,128], index: 1, kind: input, shape index: {}]
  %s2 = inlined_call_operand.vmem [shape: f32[1,128], index: 2, kind: input, shape index: {}]
  %s3 = inlined_call_operand.vmem [shape: bf16[128,128], index: 3, kind: input, shape index: {}]
  %s4 = inlined_call_operand.vmem [shape: f32[1,128], index: 4, kind: input, shape index: {}]
  %s5 = inlined_call_operand.vmem [shape: bf16[128,128], index: 5, kind: input, shape index: {}]
  %s6 = inlined_call_operand.vmem [shape: f32[1,128], index: 6, kind: input, shape index: {}]
  %s7 = inlined_call_operand.vmem [shape: bf16[128,128], index: 7, kind: input, shape index: {}]
  %s8 = inlined_call_operand.vmem [shape: f32[1,128], index: 8, kind: input, shape index: {}]
  %s9 = inlined_call_operand.vmem [shape: bf16[1024,128], index: 9, kind: output, shape index: {}]
  %s10 = sld [smem:[#allocation0]]
  $region69: #{atom_embedding_forward.1} parent=0
    _
  %s12 = ssub.s32 1, %s10
  %s13 = scalar_select 0, %s12, %s10
  loop: start=0, step=1, limit=4
  $region2: #{atom_embedding_forward.1} parent=0 // loop_pre_header
    _
  $region3: #{atom_embedding_forward.1} parent=0 // loop_header
    %s15 = sphi 0, %s19
    %p16 = scmp.ge.s32.totalorder %s15, 4
    %s25 = sphi 0, %s27
    %s28 = sphi 0, %s25
    %s29 = sphi 0, %s28
    %s45 = sphi 0, %s29
    %s49 = sphi 0, %s49
    %s51 = sphi 0, %s49
    %s52 = sphi 0, %s51
    %s66 = sphi 0, %s52
    %s70 = sphi 0, %s70
    %s72 = sphi 0, %s70
    %s73 = sphi 0, %s72
    %s87 = sphi 0, %s73
    %s91 = sphi 0, %s91
    %s93 = sphi 0, %s91
    %s94 = sphi 0, %s93
    %s108 = sphi 0, %s94
    %s112 = sphi 0, %s112
    %s114 = sphi 0, %s112
    %s115 = sphi 0, %s114
    %s129 = sphi 0, %s115
    %s133 = sphi 0, %s133
    %s135 = sphi 0, %s133
    %s136 = sphi 0, %s135
    %s150 = sphi 0, %s136
    %s154 = sphi 0, %s154
    %s156 = sphi 0, %s154
    %s157 = sphi 0, %s156
    %s171 = sphi 0, %s157
    %s175 = sphi 0, %s175
    %s177 = sphi 0, %s175
    %s178 = sphi 0, %s177
    %s192 = sphi 0, %s178
    %s196 = sphi 0, %s196
    %s198 = sphi 0, %s196
    %s199 = sphi 0, %s198
    %s213 = sphi 0, %s199
    %s219 = sphi 0, %s221
    %s222 = sphi 0, %s219
    %s223 = sphi 0, %s222
    %s239 = sphi 0, %s223
  $region4: #{atom_embedding_forward.1} parent=0 // loop_header_branch
    %18 = sbr.rel (%p16) target = $region8
  $region5: #{atom_embedding_forward.1} parent=0 // loop_body
    %s20 = ssub.s32 %s15, 1
    %s21 = ssub.s32 %s15, 2
    %s22 = sadd.s32 %s15, 1
    %s23 = ssub.s32 %s15, %s22
    %p24 = scmp.eq.s32.totalorder %s23, 0
    %s26 = sadd.s32 %s25, 1
    %s27 = scalar_select %p24, %s25, %s26
    %p30 = pneg %p24
    %p31 = scmp.eq.s32.totalorder %s15, 1
    %p32 = por %p30, %p31
    %p33 = scmp.ne.s32.totalorder %s25, %s28
    %p34 = scmp.eq.s32.totalorder %s15, 0
    %p35 = por %p33, %p34
    %p36 = scmp.ne.s32.totalorder %s25, %s28
    %p37 = scmp.eq.s32.totalorder %s20, 1
    %p38 = por %p36, %p37
    %p39 = scmp.ne.s32.totalorder %s28, %s29
    %p40 = scmp.eq.s32.totalorder %s20, 0
    %p41 = por %p39, %p40
    %p42 = scmp.ne.s32.totalorder %s28, %s29
    %p43 = scmp.eq.s32.totalorder %s21, 1
    %p44 = por %p42, %p43
    %p46 = scmp.ne.s32.totalorder %s29, %s45
    %p47 = scmp.eq.s32.totalorder %s21, 0
    %p48 = por %p46, %p47
    %s50 = sadd.s32 %s49, 1
    %p53 = scmp.eq.s32.totalorder %s15, 1
    %p54 = scmp.ne.s32.totalorder %s49, %s51
    %p55 = scmp.eq.s32.totalorder %s15, 0
    %p56 = por %p54, %p55
    %p57 = scmp.ne.s32.totalorder %s49, %s51
    %p58 = scmp.eq.s32.totalorder %s20, 1
    %p59 = por %p57, %p58
    %p60 = scmp.ne.s32.totalorder %s51, %s52
    %p61 = scmp.eq.s32.totalorder %s20, 0
    %p62 = por %p60, %p61
    %p63 = scmp.ne.s32.totalorder %s51, %s52
    %p64 = scmp.eq.s32.totalorder %s21, 1
    %p65 = por %p63, %p64
    %p67 = scmp.ne.s32.totalorder %s52, %s66
    %p68 = scmp.eq.s32.totalorder %s21, 0
    %p69 = por %p67, %p68
    %s71 = sadd.s32 %s70, 1
    %p74 = scmp.eq.s32.totalorder %s15, 1
    %p75 = scmp.ne.s32.totalorder %s70, %s72
    %p76 = scmp.eq.s32.totalorder %s15, 0
    %p77 = por %p75, %p76
    %p78 = scmp.ne.s32.totalorder %s70, %s72
    %p79 = scmp.eq.s32.totalorder %s20, 1
    %p80 = por %p78, %p79
    %p81 = scmp.ne.s32.totalorder %s72, %s73
    %p82 = scmp.eq.s32.totalorder %s20, 0
    %p83 = por %p81, %p82
    %p84 = scmp.ne.s32.totalorder %s72, %s73
    %p85 = scmp.eq.s32.totalorder %s21, 1
    %p86 = por %p84, %p85
    %p88 = scmp.ne.s32.totalorder %s73, %s87
    %p89 = scmp.eq.s32.totalorder %s21, 0
    %p90 = por %p88, %p89
    %s92 = sadd.s32 %s91, 1
    %p95 = scmp.eq.s32.totalorder %s15, 1
    %p96 = scmp.ne.s32.totalorder %s91, %s93
    %p97 = scmp.eq.s32.totalorder %s15, 0
    %p98 = por %p96, %p97
    %p99 = scmp.ne.s32.totalorder %s91, %s93
    %p100 = scmp.eq.s32.totalorder %s20, 1
    %p101 = por %p99, %p100
    %p102 = scmp.ne.s32.totalorder %s93, %s94
    %p103 = scmp.eq.s32.totalorder %s20, 0
    %p104 = por %p102, %p103
    %p105 = scmp.ne.s32.totalorder %s93, %s94
    %p106 = scmp.eq.s32.totalorder %s21, 1
    %p107 = por %p105, %p106
    %p109 = scmp.ne.s32.totalorder %s94, %s108
    %p110 = scmp.eq.s32.totalorder %s21, 0
    %p111 = por %p109, %p110
    %s113 = sadd.s32 %s112, 1
    %p116 = scmp.eq.s32.totalorder %s15, 1
    %p117 = scmp.ne.s32.totalorder %s112, %s114
    %p118 = scmp.eq.s32.totalorder %s15, 0
    %p119 = por %p117, %p118
    %p120 = scmp.ne.s32.totalorder %s112, %s114
    %p121 = scmp.eq.s32.totalorder %s20, 1
    %p122 = por %p120, %p121
    %p123 = scmp.ne.s32.totalorder %s114, %s115
    %p124 = scmp.eq.s32.totalorder %s20, 0
    %p125 = por %p123, %p124
    %p126 = scmp.ne.s32.totalorder %s114, %s115
    %p127 = scmp.eq.s32.totalorder %s21, 1
    %p128 = por %p126, %p127
    %p130 = scmp.ne.s32.totalorder %s115, %s129
    %p131 = scmp.eq.s32.totalorder %s21, 0
    %p132 = por %p130, %p131
    %s134 = sadd.s32 %s133, 1
    %p137 = scmp.eq.s32.totalorder %s15, 1
    %p138 = scmp.ne.s32.totalorder %s133, %s135
    %p139 = scmp.eq.s32.totalorder %s15, 0
    %p140 = por %p138, %p139
    %p141 = scmp.ne.s32.totalorder %s133, %s135
    %p142 = scmp.eq.s32.totalorder %s20, 1
    %p143 = por %p141, %p142
    %p144 = scmp.ne.s32.totalorder %s135, %s136
    %p145 = scmp.eq.s32.totalorder %s20, 0
    %p146 = por %p144, %p145
    %p147 = scmp.ne.s32.totalorder %s135, %s136
    %p148 = scmp.eq.s32.totalorder %s21, 1
    %p149 = por %p147, %p148
    %p151 = scmp.ne.s32.totalorder %s136, %s150
    %p152 = scmp.eq.s32.totalorder %s21, 0
    %p153 = por %p151, %p152
    %s155 = sadd.s32 %s154, 1
    %p158 = scmp.eq.s32.totalorder %s15, 1
    %p159 = scmp.ne.s32.totalorder %s154, %s156
    %p160 = scmp.eq.s32.totalorder %s15, 0
    %p161 = por %p159, %p160
    %p162 = scmp.ne.s32.totalorder %s154, %s156
    %p163 = scmp.eq.s32.totalorder %s20, 1
    %p164 = por %p162, %p163
    %p165 = scmp.ne.s32.totalorder %s156, %s157
    %p166 = scmp.eq.s32.totalorder %s20, 0
    %p167 = por %p165, %p166
    %p168 = scmp.ne.s32.totalorder %s156, %s157
    %p169 = scmp.eq.s32.totalorder %s21, 1
    %p170 = por %p168, %p169
    %p172 = scmp.ne.s32.totalorder %s157, %s171
    %p173 = scmp.eq.s32.totalorder %s21, 0
    %p174 = por %p172, %p173
    %s176 = sadd.s32 %s175, 1
    %p179 = scmp.eq.s32.totalorder %s15, 1
    %p180 = scmp.ne.s32.totalorder %s175, %s177
    %p181 = scmp.eq.s32.totalorder %s15, 0
    %p182 = por %p180, %p181
    %p183 = scmp.ne.s32.totalorder %s175, %s177
    %p184 = scmp.eq.s32.totalorder %s20, 1
    %p185 = por %p183, %p184
    %p186 = scmp.ne.s32.totalorder %s177, %s178
    %p187 = scmp.eq.s32.totalorder %s20, 0
    %p188 = por %p186, %p187
    %p189 = scmp.ne.s32.totalorder %s177, %s178
    %p190 = scmp.eq.s32.totalorder %s21, 1
    %p191 = por %p189, %p190
    %p193 = scmp.ne.s32.totalorder %s178, %s192
    %p194 = scmp.eq.s32.totalorder %s21, 0
    %p195 = por %p193, %p194
    %s197 = sadd.s32 %s196, 1
    %p200 = scmp.eq.s32.totalorder %s15, 1
    %p201 = scmp.ne.s32.totalorder %s196, %s198
    %p202 = scmp.eq.s32.totalorder %s15, 0
    %p203 = por %p201, %p202
    %p204 = scmp.ne.s32.totalorder %s196, %s198
    %p205 = scmp.eq.s32.totalorder %s20, 1
    %p206 = por %p204, %p205
    %p207 = scmp.ne.s32.totalorder %s198, %s199
    %p208 = scmp.eq.s32.totalorder %s20, 0
    %p209 = por %p207, %p208
    %p210 = scmp.ne.s32.totalorder %s198, %s199
    %p211 = scmp.eq.s32.totalorder %s21, 1
    %p212 = por %p210, %p211
    %p214 = scmp.ne.s32.totalorder %s199, %s213
    %p215 = scmp.eq.s32.totalorder %s21, 0
    %p216 = por %p214, %p215
    %s217 = ssub.s32 %s15, %s22
    %p218 = scmp.eq.s32.totalorder %s217, 0
    %s220 = sadd.s32 %s219, 1
    %s221 = scalar_select %p218, %s219, %s220
    %p224 = pneg %p218
    %p225 = scmp.eq.s32.totalorder %s15, 1
    %p226 = por %p224, %p225
    %p227 = scmp.ne.s32.totalorder %s219, %s222
    %p228 = scmp.eq.s32.totalorder %s15, 0
    %p229 = por %p227, %p228
    %p230 = scmp.ne.s32.totalorder %s219, %s222
    %p231 = scmp.eq.s32.totalorder %s20, 1
    %p232 = por %p230, %p231
    %p233 = scmp.ne.s32.totalorder %s222, %s223
    %p234 = scmp.eq.s32.totalorder %s20, 0
    %p235 = por %p233, %p234
    %p236 = scmp.ne.s32.totalorder %s222, %s223
    %p237 = scmp.eq.s32.totalorder %s21, 1
    %p238 = por %p236, %p237
    %p240 = scmp.ne.s32.totalorder %s223, %s239
    %p241 = scmp.eq.s32.totalorder %s21, 0
    %p242 = por %p240, %p241
    %p243 = scmp.le.s32.totalorder 1, %s15
    %p244 = scmp.lt.s32.totalorder %s15, 3
    %p245 = pnand %p243, %p244
    %p246 = pneg %p245
    // Predicated region
    $region9: #{atom_embedding_forward.1} parent=5 // pred_check
      _
    $region10: #{atom_embedding_forward.1} parent=5 // pred_check_branch
      %248 = sbr.rel (%p245) target = $region12
    $region11: #{atom_embedding_forward.1} parent=5 // pred_region
      %s249 = ssub.s32 %s15, 1
      // Predicated region
      $region13: #{atom_embedding_forward.1} parent=11 // pred_check
        %p250 = pneg %p62
      $region14: #{atom_embedding_forward.1} parent=11 // pred_check_branch
        %252 = sbr.rel (%p250) target = $region16
      $region15: #{atom_embedding_forward.1} parent=11 // pred_region
        _
      $region16: #{atom_embedding_forward.1} parent=11 // pred_fallthru
        _
      // Predicated region
      $region17: #{atom_embedding_forward.1} parent=11 // pred_check
        %p253 = pneg %p83
      $region18: #{atom_embedding_forward.1} parent=11 // pred_check_branch
        %255 = sbr.rel (%p253) target = $region20
      $region19: #{atom_embedding_forward.1} parent=11 // pred_region
        _
      $region20: #{atom_embedding_forward.1} parent=11 // pred_fallthru
        _
      // Predicated region
      $region21: #{atom_embedding_forward.1} parent=11 // pred_check
        %p256 = pneg %p104
      $region22: #{atom_embedding_forward.1} parent=11 // pred_check_branch
        %258 = sbr.rel (%p256) target = $region24
      $region23: #{atom_embedding_forward.1} parent=11 // pred_region
        _
      $region24: #{atom_embedding_forward.1} parent=11 // pred_fallthru
        _
      // Predicated region
      $region25: #{atom_embedding_forward.1} parent=11 // pred_check
        %p259 = pneg %p125
      $region26: #{atom_embedding_forward.1} parent=11 // pred_check_branch
        %261 = sbr.rel (%p259) target = $region28
      $region27: #{atom_embedding_forward.1} parent=11 // pred_region
        _
      $region28: #{atom_embedding_forward.1} parent=11 // pred_fallthru
        _
      // Predicated region
      $region29: #{atom_embedding_forward.1} parent=11 // pred_check
        %p262 = pneg %p146
      $region30: #{atom_embedding_forward.1} parent=11 // pred_check_branch
        %264 = sbr.rel (%p262) target = $region32
      $region31: #{atom_embedding_forward.1} parent=11 // pred_region
        _
      $region32: #{atom_embedding_forward.1} parent=11 // pred_fallthru
        _
      // Predicated region
      $region33: #{atom_embedding_forward.1} parent=11 // pred_check
        %p265 = pneg %p167
      $region34: #{atom_embedding_forward.1} parent=11 // pred_check_branch
        %267 = sbr.rel (%p265) target = $region36
      $region35: #{atom_embedding_forward.1} parent=11 // pred_region
        _
      $region36: #{atom_embedding_forward.1} parent=11 // pred_fallthru
        _
      // Predicated region
      $region37: #{atom_embedding_forward.1} parent=11 // pred_check
        %p268 = pneg %p188
      $region38: #{atom_embedding_forward.1} parent=11 // pred_check_branch
        %270 = sbr.rel (%p268) target = $region40
      $region39: #{atom_embedding_forward.1} parent=11 // pred_region
        _
      $region40: #{atom_embedding_forward.1} parent=11 // pred_fallthru
        _
      // Predicated region
      $region41: #{atom_embedding_forward.1} parent=11 // pred_check
        %p271 = pneg %p209
      $region42: #{atom_embedding_forward.1} parent=11 // pred_check_branch
        %273 = sbr.rel (%p271) target = $region44
      $region43: #{atom_embedding_forward.1} parent=11 // pred_region
        _
      $region44: #{atom_embedding_forward.1} parent=11 // pred_fallthru
        _
    $region12: #{atom_embedding_forward.1} parent=5 // pred_fallthru
      _
    %p274 = scmp.lt.s32.totalorder %s15, 2
    // Predicated region
    $region45: #{atom_embedding_forward.1} parent=5 // pred_check
      %p275 = pneg %p274
    $region46: #{atom_embedding_forward.1} parent=5 // pred_check_branch
      %277 = sbr.rel (%p275) target = $region48
    $region47: #{atom_embedding_forward.1} parent=5 // pred_region
      // Predicated region
      $region49: #{atom_embedding_forward.1} parent=47 // pred_check
        %p278 = pneg %p35
      $region50: #{atom_embedding_forward.1} parent=47 // pred_check_branch
        %280 = sbr.rel (%p278) target = $region52
      $region51: #{atom_embedding_forward.1} parent=47 // pred_region
        %s281 = smul.u32 64, %s15
        %p282 = scmp.lt.s32.totalorder %s281, 127
        %s283 = scalar_select %p282, %s281, 127
        %s284 = smul.addr %s283, 4
        %s285 = scalar_lea.vmem %s0, %s284
        %s286 = smul.u32 64, %s15
      $region52: #{atom_embedding_forward.1} parent=47 // pred_fallthru
        _
    $region48: #{atom_embedding_forward.1} parent=5 // pred_fallthru
      _
    %p287 = scmp.le.s32.totalorder 1, %s15
    %p288 = scmp.lt.s32.totalorder %s15, 3
    %p289 = pnand %p287, %p288
    %p290 = pneg %p289
    // Predicated region
    $region53: #{atom_embedding_forward.1} parent=5 // pred_check
      _
    $region54: #{atom_embedding_forward.1} parent=5 // pred_check_branch
      %292 = sbr.rel (%p289) target = $region56
    $region55: #{atom_embedding_forward.1} parent=5 // pred_region
      %s293 = ssub.s32 %s15, 1
      %s294 = smul.u32 64, %s20
      %p295 = scmp.lt.s32.totalorder %s294, 127
      %s296 = scalar_select %p295, %s294, 127
      %s297 = smul.addr %s296, 4
      %s298 = scalar_lea.vmem %s0, %s297
      %p299 = pneg %p41
      %p300 = pneg %p38
      %p301 = pneg %p62
      %p302 = pneg %p59
      %p303 = pneg %p83
      %p304 = pneg %p80
      %p305 = pneg %p104
      %p306 = pneg %p101
      %p307 = pneg %p125
      %p308 = pneg %p122
      %p309 = pneg %p146
      %p310 = pneg %p143
      %p311 = pneg %p167
      %p312 = pneg %p164
      %p313 = pneg %p188
      %p314 = pneg %p185
      %p315 = pneg %p209
      %p316 = pneg %p206
      %p317 = pneg %p235
      %p318 = pneg %p232
      %s319 = smul.u32 64, %s20
      %p320 = scmp.lt.s32.totalorder %s319, 127
      %s321 = scalar_select %p320, %s319, 127
      %s322 = smul.addr %s321, 4
      %s323 = scalar_lea.vmem %s9, %s322
      %s324 = smul.u32 64, %s20
      %p325 = scmp.lt.s32.totalorder %s324, 127
      %s326 = scalar_select %p325, %s324, 127
      %s327 = smul.addr %s326, 4
      %s328 = scalar_lea.vmem %s0, %s327
      %s329 = smul.u32 64, %s20
      %s330 = smul.u32 64, %s20
      %p331 = scmp.lt.s32.totalorder %s330, 127
      %s332 = scalar_select %p331, %s330, 127
      %s333 = smul.addr %s332, 4
      %s334 = scalar_lea.vmem %s9, %s333
      %s335 = smul.u32 64, %s20
      %v337 = vld [vmem:[%s328] sm:$0xf]
      %v338 = vld [vmem:[%s328 + $0x4] sm:$0xf]
      %v339 = vld [vmem:[%s328 + $0x8] sm:$0xf]
      %v340 = vld [vmem:[%s328 + $0xc] sm:$0xf]
      %v341 = vld [vmem:[%s328 + $0x10] sm:$0xf]
      %v342 = vld [vmem:[%s328 + $0x14] sm:$0xf]
      %v343 = vld [vmem:[%s328 + $0x18] sm:$0xf]
      %v344 = vld [vmem:[%s328 + $0x1c] sm:$0xf]
      %v345 = vld [vmem:[%s328 + $0x20] sm:$0xf]
      %v346 = vld [vmem:[%s328 + $0x24] sm:$0xf]
      %v347 = vld [vmem:[%s328 + $0x28] sm:$0xf]
      %v348 = vld [vmem:[%s328 + $0x2c] sm:$0xf]
      %v349 = vld [vmem:[%s328 + $0x30] sm:$0xf]
      %v350 = vld [vmem:[%s328 + $0x34] sm:$0xf]
      %v351 = vld [vmem:[%s328 + $0x38] sm:$0xf]
      %v352 = vld [vmem:[%s328 + $0x3c] sm:$0xf]
      %v353 = vld [vmem:[%s328 + $0x40] sm:$0xf]
      %v354 = vld [vmem:[%s328 + $0x44] sm:$0xf]
      %v355 = vld [vmem:[%s328 + $0x48] sm:$0xf]
      %v356 = vld [vmem:[%s328 + $0x4c] sm:$0xf]
      %v357 = vld [vmem:[%s328 + $0x50] sm:$0xf]
      %v358 = vld [vmem:[%s328 + $0x54] sm:$0xf]
      %v359 = vld [vmem:[%s328 + $0x58] sm:$0xf]
      %v360 = vld [vmem:[%s328 + $0x5c] sm:$0xf]
      %v361 = vld [vmem:[%s328 + $0x60] sm:$0xf]
      %v362 = vld [vmem:[%s328 + $0x64] sm:$0xf]
      %v363 = vld [vmem:[%s328 + $0x68] sm:$0xf]
      %v364 = vld [vmem:[%s328 + $0x6c] sm:$0xf]
      %v365 = vld [vmem:[%s328 + $0x70] sm:$0xf]
      %v366 = vld [vmem:[%s328 + $0x74] sm:$0xf]
      %v367 = vld [vmem:[%s328 + $0x78] sm:$0xf]
      %v368 = vld [vmem:[%s328 + $0x7c] sm:$0xf]
      %v369 = vld [vmem:[%s328 + $0x80] sm:$0xf]
      %v370 = vld [vmem:[%s328 + $0x84] sm:$0xf]
      %v371 = vld [vmem:[%s328 + $0x88] sm:$0xf]
      %v372 = vld [vmem:[%s328 + $0x8c] sm:$0xf]
      %v373 = vld [vmem:[%s328 + $0x90] sm:$0xf]
      %v374 = vld [vmem:[%s328 + $0x94] sm:$0xf]
      %v375 = vld [vmem:[%s328 + $0x98] sm:$0xf]
      %v376 = vld [vmem:[%s328 + $0x9c] sm:$0xf]
      %v377 = vld [vmem:[%s328 + $0xa0] sm:$0xf]
      %v378 = vld [vmem:[%s328 + $0xa4] sm:$0xf]
      %v379 = vld [vmem:[%s328 + $0xa8] sm:$0xf]
      %v380 = vld [vmem:[%s328 + $0xac] sm:$0xf]
      %v381 = vld [vmem:[%s328 + $0xb0] sm:$0xf]
      %v382 = vld [vmem:[%s328 + $0xb4] sm:$0xf]
      %v383 = vld [vmem:[%s328 + $0xb8] sm:$0xf]
      %v384 = vld [vmem:[%s328 + $0xbc] sm:$0xf]
      %v385 = vld [vmem:[%s328 + $0xc0] sm:$0xf]
      %v386 = vld [vmem:[%s328 + $0xc4] sm:$0xf]
      %v387 = vld [vmem:[%s328 + $0xc8] sm:$0xf]
      %v388 = vld [vmem:[%s328 + $0xcc] sm:$0xf]
      %v389 = vld [vmem:[%s328 + $0xd0] sm:$0xf]
      %v390 = vld [vmem:[%s328 + $0xd4] sm:$0xf]
      %v391 = vld [vmem:[%s328 + $0xd8] sm:$0xf]
      %v392 = vld [vmem:[%s328 + $0xdc] sm:$0xf]
      %v393 = vld [vmem:[%s328 + $0xe0] sm:$0xf]
      %v394 = vld [vmem:[%s328 + $0xe4] sm:$0xf]
      %v395 = vld [vmem:[%s328 + $0xe8] sm:$0xf]
      %v396 = vld [vmem:[%s328 + $0xec] sm:$0xf]
      %v397 = vld [vmem:[%s328 + $0xf0] sm:$0xf]
      %v398 = vld [vmem:[%s328 + $0xf4] sm:$0xf]
      %v399 = vld [vmem:[%s328 + $0xf8] sm:$0xf]
      %v400 = vld [vmem:[%s328 + $0xfc] sm:$0xf]
      %v401 = vld [vmem:[%s1] sm:$0xf]
      %v402 = vld [vmem:[%s1 + $0x4] sm:$0xf]
      %v403 = vld [vmem:[%s1 + $0x8] sm:$0xf]
      %v404 = vld [vmem:[%s1 + $0xc] sm:$0x3]
      %v405 = vld [vmem:[%s2] sm:$0x1]
      %v407 = vperm.slane %v405, 0
      %v473 = vunpack.c.l.b16 %v337
      %v474 = vunpack.c.l.b16 %v338
      %v475 = vunpack.c.l.b16 %v339
      %v476 = vunpack.c.l.b16 %v340
      %v477 = vunpack.c.l.b16 %v341
      %v478 = vunpack.c.l.b16 %v342
      %v479 = vunpack.c.l.b16 %v343
      %v480 = vunpack.c.l.b16 %v344
      %v481 = vunpack.c.l.b16 %v345
      %v482 = vunpack.c.l.b16 %v346
      %v483 = vunpack.c.l.b16 %v347
      %v484 = vunpack.c.l.b16 %v348
      %v485 = vunpack.c.l.b16 %v349
      %v486 = vunpack.c.l.b16 %v350
      %v487 = vunpack.c.l.b16 %v351
      %v488 = vunpack.c.l.b16 %v352
      %v489 = vunpack.c.l.b16 %v353
      %v490 = vunpack.c.l.b16 %v354
      %v491 = vunpack.c.l.b16 %v355
      %v492 = vunpack.c.l.b16 %v356
      %v493 = vunpack.c.l.b16 %v357
      %v494 = vunpack.c.l.b16 %v358
      %v495 = vunpack.c.l.b16 %v359
      %v496 = vunpack.c.l.b16 %v360
      %v497 = vunpack.c.l.b16 %v361
      %v498 = vunpack.c.l.b16 %v362
      %v499 = vunpack.c.l.b16 %v363
      %v500 = vunpack.c.l.b16 %v364
      %v501 = vunpack.c.l.b16 %v365
      %v502 = vunpack.c.l.b16 %v366
      %v503 = vunpack.c.l.b16 %v367
      %v504 = vunpack.c.l.b16 %v368
      %v505 = vunpack.c.l.b16 %v369
      %v506 = vunpack.c.l.b16 %v370
      %v507 = vunpack.c.l.b16 %v371
      %v508 = vunpack.c.l.b16 %v372
      %v509 = vunpack.c.l.b16 %v373
      %v510 = vunpack.c.l.b16 %v374
      %v511 = vunpack.c.l.b16 %v375
      %v512 = vunpack.c.l.b16 %v376
      %v513 = vunpack.c.l.b16 %v377
      %v514 = vunpack.c.l.b16 %v378
      %v515 = vunpack.c.l.b16 %v379
      %v516 = vunpack.c.l.b16 %v380
      %v517 = vunpack.c.l.b16 %v381
      %v518 = vunpack.c.l.b16 %v382
      %v519 = vunpack.c.l.b16 %v383
      %v520 = vunpack.c.l.b16 %v384
      %v521 = vunpack.c.l.b16 %v385
      %v522 = vunpack.c.l.b16 %v386
      %v523 = vunpack.c.l.b16 %v387
      %v524 = vunpack.c.l.b16 %v388
      %v525 = vunpack.c.l.b16 %v389
      %v526 = vunpack.c.l.b16 %v390
      %v527 = vunpack.c.l.b16 %v391
      %v528 = vunpack.c.l.b16 %v392
      %v529 = vunpack.c.l.b16 %v393
      %v530 = vunpack.c.l.b16 %v394
      %v531 = vunpack.c.l.b16 %v395
      %v532 = vunpack.c.l.b16 %v396
      %v533 = vunpack.c.l.b16 %v397
      %v534 = vunpack.c.l.b16 %v398
      %v535 = vunpack.c.l.b16 %v399
      %v536 = vunpack.c.l.b16 %v400
      %v537 = vpack.c.b16 %v474, %v473
      %v538 = vpack.c.b16 %v476, %v475
      %v539 = vpack.c.b16 %v478, %v477
      %v540 = vpack.c.b16 %v480, %v479
      %v541 = vpack.c.b16 %v482, %v481
      %v542 = vpack.c.b16 %v484, %v483
      %v543 = vpack.c.b16 %v486, %v485
      %v544 = vpack.c.b16 %v488, %v487
      %v545 = vpack.c.b16 %v490, %v489
      %v546 = vpack.c.b16 %v492, %v491
      %v547 = vpack.c.b16 %v494, %v493
      %v548 = vpack.c.b16 %v496, %v495
      %v549 = vpack.c.b16 %v498, %v497
      %v550 = vpack.c.b16 %v500, %v499
      %v551 = vpack.c.b16 %v502, %v501
      %v552 = vpack.c.b16 %v504, %v503
      %v553 = vpack.c.b16 %v506, %v505
      %v554 = vpack.c.b16 %v508, %v507
      %v555 = vpack.c.b16 %v510, %v509
      %v556 = vpack.c.b16 %v512, %v511
      %v557 = vpack.c.b16 %v514, %v513
      %v558 = vpack.c.b16 %v516, %v515
      %v559 = vpack.c.b16 %v518, %v517
      %v560 = vpack.c.b16 %v520, %v519
      %v561 = vpack.c.b16 %v522, %v521
      %v562 = vpack.c.b16 %v524, %v523
      %v563 = vpack.c.b16 %v526, %v525
      %v564 = vpack.c.b16 %v528, %v527
      %v565 = vpack.c.b16 %v530, %v529
      %v566 = vpack.c.b16 %v532, %v531
      %v567 = vpack.c.b16 %v534, %v533
      %v568 = vpack.c.b16 %v536, %v535
      %v573 = vunpack.c.l.b16 %v401
      %v574 = vunpack.c.l.b16 %v402
      %v575 = vunpack.c.l.b16 %v403
      %v576 = vunpack.c.l.b16 %v404
      %v577 = vpack.c.b16 %v574, %v573
      %v578 = vpack.c.b16 %v576, %v575
      %vm580 = vcmask 220160
      %v582 = vsel %vm580, %v537, 0
      %v585 = vsel %vm580, %v538, 0
      %v588 = vsel %vm580, %v539, 0
      %v591 = vsel %vm580, %v540, 0
      %v594 = vsel %vm580, %v541, 0
      %v597 = vsel %vm580, %v542, 0
      %v600 = vsel %vm580, %v543, 0
      %v603 = vsel %vm580, %v544, 0
      %v606 = vsel %vm580, %v545, 0
      %v609 = vsel %vm580, %v546, 0
      %v612 = vsel %vm580, %v547, 0
      %v615 = vsel %vm580, %v548, 0
      %v618 = vsel %vm580, %v549, 0
      %v621 = vsel %vm580, %v550, 0
      %v624 = vsel %vm580, %v551, 0
      %v627 = vsel %vm580, %v552, 0
      %v630 = vsel %vm580, %v553, 0
      %v633 = vsel %vm580, %v554, 0
      %v636 = vsel %vm580, %v555, 0
      %v639 = vsel %vm580, %v556, 0
      %v642 = vsel %vm580, %v557, 0
      %v645 = vsel %vm580, %v558, 0
      %v648 = vsel %vm580, %v559, 0
      %v651 = vsel %vm580, %v560, 0
      %v654 = vsel %vm580, %v561, 0
      %v657 = vsel %vm580, %v562, 0
      %v660 = vsel %vm580, %v563, 0
      %v663 = vsel %vm580, %v564, 0
      %v666 = vsel %vm580, %v565, 0
      %v669 = vsel %vm580, %v566, 0
      %v672 = vsel %vm580, %v567, 0
      %v675 = vsel %vm580, %v568, 0
      %vm677 = vcmask 1044480
      %vm678 = vcmask 1045504
      %v679 = vsel %vm677, 4294967295, 65535
      %v680 = vsel %vm678, %v679, 0
      %v682 = vand.u32 %v578, %v680
      %684 = vmatpush.bf16.msra.mxu0 0
      %685 = vmatpush.bf16.msra.mxu0 0
      %686 = vmatpush.bf16.msra.mxu0 0
      %687 = vmatpush.bf16.msra.mxu0 0
      %688 = vmatpush.bf16.msra.mxu0 0
      %689 = vmatpush.bf16.msra.mxu0 0
      %690 = vmatpush.bf16.msra.mxu0 %v682
      %691 = vmatpush.bf16.msra.mxu0 %v577
      %692 = vmatmul.bf16.gmra.mxu0 %v582
      %v693 = vpop.f32.mrf.mxu0
      %v694 = vadd.f32 %v407, %v693
      %v695 = vpop.f32.mrf.mxu0
      %v696 = vadd.f32 %v407, %v695
      %697 = vmatmul.bf16.gmra.mxu0 %v585
      %v698 = vpop.f32.mrf.mxu0
      %v699 = vadd.f32 %v407, %v698
      %v700 = vpop.f32.mrf.mxu0
      %v701 = vadd.f32 %v407, %v700
      %702 = vmatmul.bf16.gmra.mxu0 %v588
      %v703 = vpop.f32.mrf.mxu0
      %v704 = vadd.f32 %v407, %v703
      %v705 = vpop.f32.mrf.mxu0
      %v706 = vadd.f32 %v407, %v705
      %707 = vmatmul.bf16.gmra.mxu0 %v591
      %v708 = vpop.f32.mrf.mxu0
      %v709 = vadd.f32 %v407, %v708
      %v710 = vpop.f32.mrf.mxu0
      %v711 = vadd.f32 %v407, %v710
      %712 = vmatmul.bf16.gmra.mxu0 %v594
      %v713 = vpop.f32.mrf.mxu0
      %v714 = vadd.f32 %v407, %v713
      %v715 = vpop.f32.mrf.mxu0
      %v716 = vadd.f32 %v407, %v715
      %717 = vmatmul.bf16.gmra.mxu0 %v597
      %v718 = vpop.f32.mrf.mxu0
      %v719 = vadd.f32 %v407, %v718
      %v720 = vpop.f32.mrf.mxu0
      %v721 = vadd.f32 %v407, %v720
      %722 = vmatmul.bf16.gmra.mxu0 %v600
      %v723 = vpop.f32.mrf.mxu0
      %v724 = vadd.f32 %v407, %v723
      %v725 = vpop.f32.mrf.mxu0
      %v726 = vadd.f32 %v407, %v725
      %727 = vmatmul.bf16.gmra.mxu0 %v603
      %v728 = vpop.f32.mrf.mxu0
      %v729 = vadd.f32 %v407, %v728
      %v730 = vpop.f32.mrf.mxu0
      %v731 = vadd.f32 %v407, %v730
      %732 = vmatmul.bf16.gmra.mxu0 %v606
      %v733 = vpop.f32.mrf.mxu0
      %v734 = vadd.f32 %v407, %v733
      %v735 = vpop.f32.mrf.mxu0
      %v736 = vadd.f32 %v407, %v735
      %737 = vmatmul.bf16.gmra.mxu0 %v609
      %v738 = vpop.f32.mrf.mxu0
      %v739 = vadd.f32 %v407, %v738
      %v740 = vpop.f32.mrf.mxu0
      %v741 = vadd.f32 %v407, %v740
      %742 = vmatmul.bf16.gmra.mxu0 %v612
      %v743 = vpop.f32.mrf.mxu0
      %v744 = vadd.f32 %v407, %v743
      %v745 = vpop.f32.mrf.mxu0
      %v746 = vadd.f32 %v407, %v745
      %747 = vmatmul.bf16.gmra.mxu0 %v615
      %v748 = vpop.f32.mrf.mxu0
      %v749 = vadd.f32 %v407, %v748
      %v750 = vpop.f32.mrf.mxu0
      %v751 = vadd.f32 %v407, %v750
      %752 = vmatmul.bf16.gmra.mxu0 %v618
      %v753 = vpop.f32.mrf.mxu0
      %v754 = vadd.f32 %v407, %v753
      %v755 = vpop.f32.mrf.mxu0
      %v756 = vadd.f32 %v407, %v755
      %757 = vmatmul.bf16.gmra.mxu0 %v621
      %v758 = vpop.f32.mrf.mxu0
      %v759 = vadd.f32 %v407, %v758
      %v760 = vpop.f32.mrf.mxu0
      %v761 = vadd.f32 %v407, %v760
      %762 = vmatmul.bf16.gmra.mxu0 %v624
      %v763 = vpop.f32.mrf.mxu0
      %v764 = vadd.f32 %v407, %v763
      %v765 = vpop.f32.mrf.mxu0
      %v766 = vadd.f32 %v407, %v765
      %767 = vmatmul.bf16.gmra.mxu0 %v627
      %v768 = vpop.f32.mrf.mxu0
      %v769 = vadd.f32 %v407, %v768
      %v770 = vpop.f32.mrf.mxu0
      %v771 = vadd.f32 %v407, %v770
      %772 = vmatmul.bf16.gmra.mxu0 %v630
      %v773 = vpop.f32.mrf.mxu0
      %v774 = vadd.f32 %v407, %v773
      %v775 = vpop.f32.mrf.mxu0
      %v776 = vadd.f32 %v407, %v775
      %777 = vmatmul.bf16.gmra.mxu0 %v633
      %v778 = vpop.f32.mrf.mxu0
      %v779 = vadd.f32 %v407, %v778
      %v780 = vpop.f32.mrf.mxu0
      %v781 = vadd.f32 %v407, %v780
      %782 = vmatmul.bf16.gmra.mxu0 %v636
      %v783 = vpop.f32.mrf.mxu0
      %v784 = vadd.f32 %v407, %v783
      %v785 = vpop.f32.mrf.mxu0
      %v786 = vadd.f32 %v407, %v785
      %787 = vmatmul.bf16.gmra.mxu0 %v639
      %v788 = vpop.f32.mrf.mxu0
      %v789 = vadd.f32 %v407, %v788
      %v790 = vpop.f32.mrf.mxu0
      %v791 = vadd.f32 %v407, %v790
      %792 = vmatmul.bf16.gmra.mxu0 %v642
      %v793 = vpop.f32.mrf.mxu0
      %v794 = vadd.f32 %v407, %v793
      %v795 = vpop.f32.mrf.mxu0
      %v796 = vadd.f32 %v407, %v795
      %797 = vmatmul.bf16.gmra.mxu0 %v645
      %v798 = vpop.f32.mrf.mxu0
      %v799 = vadd.f32 %v407, %v798
      %v800 = vpop.f32.mrf.mxu0
      %v801 = vadd.f32 %v407, %v800
      %802 = vmatmul.bf16.gmra.mxu0 %v648
      %v803 = vpop.f32.mrf.mxu0
      %v804 = vadd.f32 %v407, %v803
      %v805 = vpop.f32.mrf.mxu0
      %v806 = vadd.f32 %v407, %v805
      %807 = vmatmul.bf16.gmra.mxu0 %v651
      %v808 = vpop.f32.mrf.mxu0
      %v809 = vadd.f32 %v407, %v808
      %v810 = vpop.f32.mrf.mxu0
      %v811 = vadd.f32 %v407, %v810
      %812 = vmatmul.bf16.gmra.mxu0 %v654
      %v813 = vpop.f32.mrf.mxu0
      %v814 = vadd.f32 %v407, %v813
      %v815 = vpop.f32.mrf.mxu0
      %v816 = vadd.f32 %v407, %v815
      %817 = vmatmul.bf16.gmra.mxu0 %v657
      %v818 = vpop.f32.mrf.mxu0
      %v819 = vadd.f32 %v407, %v818
      %v820 = vpop.f32.mrf.mxu0
      %v821 = vadd.f32 %v407, %v820
      %822 = vmatmul.bf16.gmra.mxu0 %v660
      %v823 = vpop.f32.mrf.mxu0
      %v824 = vadd.f32 %v407, %v823
      %v825 = vpop.f32.mrf.mxu0
      %v826 = vadd.f32 %v407, %v825
      %827 = vmatmul.bf16.gmra.mxu0 %v663
      %v828 = vpop.f32.mrf.mxu0
      %v829 = vadd.f32 %v407, %v828
      %v830 = vpop.f32.mrf.mxu0
      %v831 = vadd.f32 %v407, %v830
      %832 = vmatmul.bf16.gmra.mxu0 %v666
      %v833 = vpop.f32.mrf.mxu0
      %v834 = vadd.f32 %v407, %v833
      %v835 = vpop.f32.mrf.mxu0
      %v836 = vadd.f32 %v407, %v835
      %837 = vmatmul.bf16.gmra.mxu0 %v669
      %v838 = vpop.f32.mrf.mxu0
      %v839 = vadd.f32 %v407, %v838
      %v840 = vpop.f32.mrf.mxu0
      %v841 = vadd.f32 %v407, %v840
      %842 = vmatmul.bf16.gmra.mxu0 %v672
      %v843 = vpop.f32.mrf.mxu0
      %v844 = vadd.f32 %v407, %v843
      %v845 = vpop.f32.mrf.mxu0
      %v846 = vadd.f32 %v407, %v845
      %847 = vmatmul.bf16.gmra.mxu0 %v675
      %v848 = vpop.f32.mrf.mxu0
      %v849 = vadd.f32 %v407, %v848
      %v850 = vpop.f32.mrf.mxu0
      %v851 = vadd.f32 %v407, %v850
      %852 = vdwg.mxu0
      %v853 = vmax.f32 %v694, 0.0
      %v854 = vmax.f32 %v696, 0.0
      %v855 = vmax.f32 %v699, 0.0
      %v856 = vmax.f32 %v701, 0.0
      %v857 = vmax.f32 %v704, 0.0
      %v858 = vmax.f32 %v706, 0.0
      %v859 = vmax.f32 %v709, 0.0
      %v860 = vmax.f32 %v711, 0.0
      %v861 = vmax.f32 %v714, 0.0
      %v862 = vmax.f32 %v716, 0.0
      %v863 = vmax.f32 %v719, 0.0
      %v864 = vmax.f32 %v721, 0.0
      %v865 = vmax.f32 %v724, 0.0
      %v866 = vmax.f32 %v726, 0.0
      %v867 = vmax.f32 %v729, 0.0
      %v868 = vmax.f32 %v731, 0.0
      %v869 = vmax.f32 %v734, 0.0
      %v870 = vmax.f32 %v736, 0.0
      %v871 = vmax.f32 %v739, 0.0
      %v872 = vmax.f32 %v741, 0.0
      %v873 = vmax.f32 %v744, 0.0
      %v874 = vmax.f32 %v746, 0.0
      %v875 = vmax.f32 %v749, 0.0
      %v876 = vmax.f32 %v751, 0.0
      %v877 = vmax.f32 %v754, 0.0
      %v878 = vmax.f32 %v756, 0.0
      %v879 = vmax.f32 %v759, 0.0
      %v880 = vmax.f32 %v761, 0.0
      %v881 = vmax.f32 %v764, 0.0
      %v882 = vmax.f32 %v766, 0.0
      %v883 = vmax.f32 %v769, 0.0
      %v884 = vmax.f32 %v771, 0.0
      %v885 = vmax.f32 %v774, 0.0
      %v886 = vmax.f32 %v776, 0.0
      %v887 = vmax.f32 %v779, 0.0
      %v888 = vmax.f32 %v781, 0.0
      %v889 = vmax.f32 %v784, 0.0
      %v890 = vmax.f32 %v786, 0.0
      %v891 = vmax.f32 %v789, 0.0
      %v892 = vmax.f32 %v791, 0.0
      %v893 = vmax.f32 %v794, 0.0
      %v894 = vmax.f32 %v796, 0.0
      %v895 = vmax.f32 %v799, 0.0
      %v896 = vmax.f32 %v801, 0.0
      %v897 = vmax.f32 %v804, 0.0
      %v898 = vmax.f32 %v806, 0.0
      %v899 = vmax.f32 %v809, 0.0
      %v900 = vmax.f32 %v811, 0.0
      %v901 = vmax.f32 %v814, 0.0
      %v902 = vmax.f32 %v816, 0.0
      %v903 = vmax.f32 %v819, 0.0
      %v904 = vmax.f32 %v821, 0.0
      %v905 = vmax.f32 %v824, 0.0
      %v906 = vmax.f32 %v826, 0.0
      %v907 = vmax.f32 %v829, 0.0
      %v908 = vmax.f32 %v831, 0.0
      %v909 = vmax.f32 %v834, 0.0
      %v910 = vmax.f32 %v836, 0.0
      %v911 = vmax.f32 %v839, 0.0
      %v912 = vmax.f32 %v841, 0.0
      %v913 = vmax.f32 %v844, 0.0
      %v914 = vmax.f32 %v846, 0.0
      %v915 = vmax.f32 %v849, 0.0
      %v916 = vmax.f32 %v851, 0.0
      %v917 = vpack.c.bf16 %v854, %v853
      %v918 = vpack.c.bf16 %v856, %v855
      %v919 = vpack.c.bf16 %v858, %v857
      %v920 = vpack.c.bf16 %v860, %v859
      %v921 = vpack.c.bf16 %v862, %v861
      %v922 = vpack.c.bf16 %v864, %v863
      %v923 = vpack.c.bf16 %v866, %v865
      %v924 = vpack.c.bf16 %v868, %v867
      %v925 = vpack.c.bf16 %v870, %v869
      %v926 = vpack.c.bf16 %v872, %v871
      %v927 = vpack.c.bf16 %v874, %v873
      %v928 = vpack.c.bf16 %v876, %v875
      %v929 = vpack.c.bf16 %v878, %v877
      %v930 = vpack.c.bf16 %v880, %v879
      %v931 = vpack.c.bf16 %v882, %v881
      %v932 = vpack.c.bf16 %v884, %v883
      %v933 = vpack.c.bf16 %v886, %v885
      %v934 = vpack.c.bf16 %v888, %v887
      %v935 = vpack.c.bf16 %v890, %v889
      %v936 = vpack.c.bf16 %v892, %v891
      %v937 = vpack.c.bf16 %v894, %v893
      %v938 = vpack.c.bf16 %v896, %v895
      %v939 = vpack.c.bf16 %v898, %v897
      %v940 = vpack.c.bf16 %v900, %v899
      %v941 = vpack.c.bf16 %v902, %v901
      %v942 = vpack.c.bf16 %v904, %v903
      %v943 = vpack.c.bf16 %v906, %v905
      %v944 = vpack.c.bf16 %v908, %v907
      %v945 = vpack.c.bf16 %v910, %v909
      %v946 = vpack.c.bf16 %v912, %v911
      %v947 = vpack.c.bf16 %v914, %v913
      %v948 = vpack.c.bf16 %v916, %v915
      %v949 = vld [vmem:[%s3] sm:$0xf]
      %v950 = vld [vmem:[%s3 + $0x4] sm:$0xf]
      %v951 = vld [vmem:[%s3 + $0x8] sm:$0xf]
      %v952 = vld [vmem:[%s3 + $0xc] sm:$0xf]
      %v953 = vld [vmem:[%s3 + $0x10] sm:$0xf]
      %v954 = vld [vmem:[%s3 + $0x14] sm:$0xf]
      %v955 = vld [vmem:[%s3 + $0x18] sm:$0xf]
      %v956 = vld [vmem:[%s3 + $0x1c] sm:$0xf]
      %v957 = vld [vmem:[%s3 + $0x20] sm:$0xf]
      %v958 = vld [vmem:[%s3 + $0x24] sm:$0xf]
      %v959 = vld [vmem:[%s3 + $0x28] sm:$0xf]
      %v960 = vld [vmem:[%s3 + $0x2c] sm:$0xf]
      %v961 = vld [vmem:[%s3 + $0x30] sm:$0xf]
      %v962 = vld [vmem:[%s3 + $0x34] sm:$0xf]
      %v963 = vld [vmem:[%s3 + $0x38] sm:$0xf]
      %v964 = vld [vmem:[%s3 + $0x3c] sm:$0xf]
      %v965 = vld [vmem:[%s4] sm:$0x1]
      %v967 = vperm.slane %v965, 0
      %v985 = vunpack.c.l.b16 %v949
      %v986 = vunpack.c.l.b16 %v950
      %v987 = vunpack.c.l.b16 %v951
      %v988 = vunpack.c.l.b16 %v952
      %v989 = vunpack.c.l.b16 %v953
      %v990 = vunpack.c.l.b16 %v954
      %v991 = vunpack.c.l.b16 %v955
      %v992 = vunpack.c.l.b16 %v956
      %v993 = vunpack.c.l.b16 %v957
      %v994 = vunpack.c.l.b16 %v958
      %v995 = vunpack.c.l.b16 %v959
      %v996 = vunpack.c.l.b16 %v960
      %v997 = vunpack.c.l.b16 %v961
      %v998 = vunpack.c.l.b16 %v962
      %v999 = vunpack.c.l.b16 %v963
      %v1000 = vunpack.c.l.b16 %v964
      %v1001 = vpack.c.b16 %v986, %v985
      %v1002 = vpack.c.b16 %v988, %v987
      %v1003 = vpack.c.b16 %v990, %v989
      %v1004 = vpack.c.b16 %v992, %v991
      %v1005 = vpack.c.b16 %v994, %v993
      %v1006 = vpack.c.b16 %v996, %v995
      %v1007 = vpack.c.b16 %v998, %v997
      %v1008 = vpack.c.b16 %v1000, %v999
      %1017 = vmatpush.bf16.msra.mxu0 %v1008
      %1018 = vmatpush.bf16.msra.mxu0 %v1007
      %1019 = vmatpush.bf16.msra.mxu0 %v1006
      %1020 = vmatpush.bf16.msra.mxu0 %v1005
      %1021 = vmatpush.bf16.msra.mxu0 %v1004
      %1022 = vmatpush.bf16.msra.mxu0 %v1003
      %1023 = vmatpush.bf16.msra.mxu0 %v1002
      %1024 = vmatpush.bf16.msra.mxu0 %v1001
      %1025 = vmatmul.bf16.gmra.mxu0 %v917
      %v1026 = vpop.f32.mrf.mxu0
      %v1027 = vadd.f32 %v967, %v1026
      %v1028 = vpop.f32.mrf.mxu0
      %v1029 = vadd.f32 %v967, %v1028
      %1030 = vmatmul.bf16.gmra.mxu0 %v918
      %v1031 = vpop.f32.mrf.mxu0
      %v1032 = vadd.f32 %v967, %v1031
      %v1033 = vpop.f32.mrf.mxu0
      %v1034 = vadd.f32 %v967, %v1033
      %1035 = vmatmul.bf16.gmra.mxu0 %v919
      %v1036 = vpop.f32.mrf.mxu0
      %v1037 = vadd.f32 %v967, %v1036
      %v1038 = vpop.f32.mrf.mxu0
      %v1039 = vadd.f32 %v967, %v1038
      %1040 = vmatmul.bf16.gmra.mxu0 %v920
      %v1041 = vpop.f32.mrf.mxu0
      %v1042 = vadd.f32 %v967, %v1041
      %v1043 = vpop.f32.mrf.mxu0
      %v1044 = vadd.f32 %v967, %v1043
      %1045 = vmatmul.bf16.gmra.mxu0 %v921
      %v1046 = vpop.f32.mrf.mxu0
      %v1047 = vadd.f32 %v967, %v1046
      %v1048 = vpop.f32.mrf.mxu0
      %v1049 = vadd.f32 %v967, %v1048
      %1050 = vmatmul.bf16.gmra.mxu0 %v922
      %v1051 = vpop.f32.mrf.mxu0
      %v1052 = vadd.f32 %v967, %v1051
      %v1053 = vpop.f32.mrf.mxu0
      %v1054 = vadd.f32 %v967, %v1053
      %1055 = vmatmul.bf16.gmra.mxu0 %v923
      %v1056 = vpop.f32.mrf.mxu0
      %v1057 = vadd.f32 %v967, %v1056
      %v1058 = vpop.f32.mrf.mxu0
      %v1059 = vadd.f32 %v967, %v1058
      %1060 = vmatmul.bf16.gmra.mxu0 %v924
      %v1061 = vpop.f32.mrf.mxu0
      %v1062 = vadd.f32 %v967, %v1061
      %v1063 = vpop.f32.mrf.mxu0
      %v1064 = vadd.f32 %v967, %v1063
      %1065 = vmatmul.bf16.gmra.mxu0 %v925
      %v1066 = vpop.f32.mrf.mxu0
      %v1067 = vadd.f32 %v967, %v1066
      %v1068 = vpop.f32.mrf.mxu0
      %v1069 = vadd.f32 %v967, %v1068
      %1070 = vmatmul.bf16.gmra.mxu0 %v926
      %v1071 = vpop.f32.mrf.mxu0
      %v1072 = vadd.f32 %v967, %v1071
      %v1073 = vpop.f32.mrf.mxu0
      %v1074 = vadd.f32 %v967, %v1073
      %1075 = vmatmul.bf16.gmra.mxu0 %v927
      %v1076 = vpop.f32.mrf.mxu0
      %v1077 = vadd.f32 %v967, %v1076
      %v1078 = vpop.f32.mrf.mxu0
      %v1079 = vadd.f32 %v967, %v1078
      %1080 = vmatmul.bf16.gmra.mxu0 %v928
      %v1081 = vpop.f32.mrf.mxu0
      %v1082 = vadd.f32 %v967, %v1081
      %v1083 = vpop.f32.mrf.mxu0
      %v1084 = vadd.f32 %v967, %v1083
      %1085 = vmatmul.bf16.gmra.mxu0 %v929
      %v1086 = vpop.f32.mrf.mxu0
      %v1087 = vadd.f32 %v967, %v1086
      %v1088 = vpop.f32.mrf.mxu0
      %v1089 = vadd.f32 %v967, %v1088
      %1090 = vmatmul.bf16.gmra.mxu0 %v930
      %v1091 = vpop.f32.mrf.mxu0
      %v1092 = vadd.f32 %v967, %v1091
      %v1093 = vpop.f32.mrf.mxu0
      %v1094 = vadd.f32 %v967, %v1093
      %1095 = vmatmul.bf16.gmra.mxu0 %v931
      %v1096 = vpop.f32.mrf.mxu0
      %v1097 = vadd.f32 %v967, %v1096
      %v1098 = vpop.f32.mrf.mxu0
      %v1099 = vadd.f32 %v967, %v1098
      %1100 = vmatmul.bf16.gmra.mxu0 %v932
      %v1101 = vpop.f32.mrf.mxu0
      %v1102 = vadd.f32 %v967, %v1101
      %v1103 = vpop.f32.mrf.mxu0
      %v1104 = vadd.f32 %v967, %v1103
      %1105 = vmatmul.bf16.gmra.mxu0 %v933
      %v1106 = vpop.f32.mrf.mxu0
      %v1107 = vadd.f32 %v967, %v1106
      %v1108 = vpop.f32.mrf.mxu0
      %v1109 = vadd.f32 %v967, %v1108
      %1110 = vmatmul.bf16.gmra.mxu0 %v934
      %v1111 = vpop.f32.mrf.mxu0
      %v1112 = vadd.f32 %v967, %v1111
      %v1113 = vpop.f32.mrf.mxu0
      %v1114 = vadd.f32 %v967, %v1113
      %1115 = vmatmul.bf16.gmra.mxu0 %v935
      %v1116 = vpop.f32.mrf.mxu0
      %v1117 = vadd.f32 %v967, %v1116
      %v1118 = vpop.f32.mrf.mxu0
      %v1119 = vadd.f32 %v967, %v1118
      %1120 = vmatmul.bf16.gmra.mxu0 %v936
      %v1121 = vpop.f32.mrf.mxu0
      %v1122 = vadd.f32 %v967, %v1121
      %v1123 = vpop.f32.mrf.mxu0
      %v1124 = vadd.f32 %v967, %v1123
      %1125 = vmatmul.bf16.gmra.mxu0 %v937
      %v1126 = vpop.f32.mrf.mxu0
      %v1127 = vadd.f32 %v967, %v1126
      %v1128 = vpop.f32.mrf.mxu0
      %v1129 = vadd.f32 %v967, %v1128
      %1130 = vmatmul.bf16.gmra.mxu0 %v938
      %v1131 = vpop.f32.mrf.mxu0
      %v1132 = vadd.f32 %v967, %v1131
      %v1133 = vpop.f32.mrf.mxu0
      %v1134 = vadd.f32 %v967, %v1133
      %1135 = vmatmul.bf16.gmra.mxu0 %v939
      %v1136 = vpop.f32.mrf.mxu0
      %v1137 = vadd.f32 %v967, %v1136
      %v1138 = vpop.f32.mrf.mxu0
      %v1139 = vadd.f32 %v967, %v1138
      %1140 = vmatmul.bf16.gmra.mxu0 %v940
      %v1141 = vpop.f32.mrf.mxu0
      %v1142 = vadd.f32 %v967, %v1141
      %v1143 = vpop.f32.mrf.mxu0
      %v1144 = vadd.f32 %v967, %v1143
      %1145 = vmatmul.bf16.gmra.mxu0 %v941
      %v1146 = vpop.f32.mrf.mxu0
      %v1147 = vadd.f32 %v967, %v1146
      %v1148 = vpop.f32.mrf.mxu0
      %v1149 = vadd.f32 %v967, %v1148
      %1150 = vmatmul.bf16.gmra.mxu0 %v942
      %v1151 = vpop.f32.mrf.mxu0
      %v1152 = vadd.f32 %v967, %v1151
      %v1153 = vpop.f32.mrf.mxu0
      %v1154 = vadd.f32 %v967, %v1153
      %1155 = vmatmul.bf16.gmra.mxu0 %v943
      %v1156 = vpop.f32.mrf.mxu0
      %v1157 = vadd.f32 %v967, %v1156
      %v1158 = vpop.f32.mrf.mxu0
      %v1159 = vadd.f32 %v967, %v1158
      %1160 = vmatmul.bf16.gmra.mxu0 %v944
      %v1161 = vpop.f32.mrf.mxu0
      %v1162 = vadd.f32 %v967, %v1161
      %v1163 = vpop.f32.mrf.mxu0
      %v1164 = vadd.f32 %v967, %v1163
      %1165 = vmatmul.bf16.gmra.mxu0 %v945
      %v1166 = vpop.f32.mrf.mxu0
      %v1167 = vadd.f32 %v967, %v1166
      %v1168 = vpop.f32.mrf.mxu0
      %v1169 = vadd.f32 %v967, %v1168
      %1170 = vmatmul.bf16.gmra.mxu0 %v946
      %v1171 = vpop.f32.mrf.mxu0
      %v1172 = vadd.f32 %v967, %v1171
      %v1173 = vpop.f32.mrf.mxu0
      %v1174 = vadd.f32 %v967, %v1173
      %1175 = vmatmul.bf16.gmra.mxu0 %v947
      %v1176 = vpop.f32.mrf.mxu0
      %v1177 = vadd.f32 %v967, %v1176
      %v1178 = vpop.f32.mrf.mxu0
      %v1179 = vadd.f32 %v967, %v1178
      %1180 = vmatmul.bf16.gmra.mxu0 %v948
      %v1181 = vpop.f32.mrf.mxu0
      %v1182 = vadd.f32 %v967, %v1181
      %v1183 = vpop.f32.mrf.mxu0
      %v1184 = vadd.f32 %v967, %v1183
      %1185 = vdwg.mxu0
      %v1186 = vmax.f32 %v1027, 0.0
      %v1187 = vmax.f32 %v1029, 0.0
      %v1188 = vmax.f32 %v1032, 0.0
      %v1189 = vmax.f32 %v1034, 0.0
      %v1190 = vmax.f32 %v1037, 0.0
      %v1191 = vmax.f32 %v1039, 0.0
      %v1192 = vmax.f32 %v1042, 0.0
      %v1193 = vmax.f32 %v1044, 0.0
      %v1194 = vmax.f32 %v1047, 0.0
      %v1195 = vmax.f32 %v1049, 0.0
      %v1196 = vmax.f32 %v1052, 0.0
      %v1197 = vmax.f32 %v1054, 0.0
      %v1198 = vmax.f32 %v1057, 0.0
      %v1199 = vmax.f32 %v1059, 0.0
      %v1200 = vmax.f32 %v1062, 0.0
      %v1201 = vmax.f32 %v1064, 0.0
      %v1202 = vmax.f32 %v1067, 0.0
      %v1203 = vmax.f32 %v1069, 0.0
      %v1204 = vmax.f32 %v1072, 0.0
      %v1205 = vmax.f32 %v1074, 0.0
      %v1206 = vmax.f32 %v1077, 0.0
      %v1207 = vmax.f32 %v1079, 0.0
      %v1208 = vmax.f32 %v1082, 0.0
      %v1209 = vmax.f32 %v1084, 0.0
      %v1210 = vmax.f32 %v1087, 0.0
      %v1211 = vmax.f32 %v1089, 0.0
      %v1212 = vmax.f32 %v1092, 0.0
      %v1213 = vmax.f32 %v1094, 0.0
      %v1214 = vmax.f32 %v1097, 0.0
      %v1215 = vmax.f32 %v1099, 0.0
      %v1216 = vmax.f32 %v1102, 0.0
      %v1217 = vmax.f32 %v1104, 0.0
      %v1218 = vmax.f32 %v1107, 0.0
      %v1219 = vmax.f32 %v1109, 0.0
      %v1220 = vmax.f32 %v1112, 0.0
      %v1221 = vmax.f32 %v1114, 0.0
      %v1222 = vmax.f32 %v1117, 0.0
      %v1223 = vmax.f32 %v1119, 0.0
      %v1224 = vmax.f32 %v1122, 0.0
      %v1225 = vmax.f32 %v1124, 0.0
      %v1226 = vmax.f32 %v1127, 0.0
      %v1227 = vmax.f32 %v1129, 0.0
      %v1228 = vmax.f32 %v1132, 0.0
      %v1229 = vmax.f32 %v1134, 0.0
      %v1230 = vmax.f32 %v1137, 0.0
      %v1231 = vmax.f32 %v1139, 0.0
      %v1232 = vmax.f32 %v1142, 0.0
      %v1233 = vmax.f32 %v1144, 0.0
      %v1234 = vmax.f32 %v1147, 0.0
      %v1235 = vmax.f32 %v1149, 0.0
      %v1236 = vmax.f32 %v1152, 0.0
      %v1237 = vmax.f32 %v1154, 0.0
      %v1238 = vmax.f32 %v1157, 0.0
      %v1239 = vmax.f32 %v1159, 0.0
      %v1240 = vmax.f32 %v1162, 0.0
      %v1241 = vmax.f32 %v1164, 0.0
      %v1242 = vmax.f32 %v1167, 0.0
      %v1243 = vmax.f32 %v1169, 0.0
      %v1244 = vmax.f32 %v1172, 0.0
      %v1245 = vmax.f32 %v1174, 0.0
      %v1246 = vmax.f32 %v1177, 0.0
      %v1247 = vmax.f32 %v1179, 0.0
      %v1248 = vmax.f32 %v1182, 0.0
      %v1249 = vmax.f32 %v1184, 0.0
      %v1250 = vpack.c.bf16 %v1187, %v1186
      %v1251 = vpack.c.bf16 %v1189, %v1188
      %v1252 = vpack.c.bf16 %v1191, %v1190
      %v1253 = vpack.c.bf16 %v1193, %v1192
      %v1254 = vpack.c.bf16 %v1195, %v1194
      %v1255 = vpack.c.bf16 %v1197, %v1196
      %v1256 = vpack.c.bf16 %v1199, %v1198
      %v1257 = vpack.c.bf16 %v1201, %v1200
      %v1258 = vpack.c.bf16 %v1203, %v1202
      %v1259 = vpack.c.bf16 %v1205, %v1204
      %v1260 = vpack.c.bf16 %v1207, %v1206
      %v1261 = vpack.c.bf16 %v1209, %v1208
      %v1262 = vpack.c.bf16 %v1211, %v1210
      %v1263 = vpack.c.bf16 %v1213, %v1212
      %v1264 = vpack.c.bf16 %v1215, %v1214
      %v1265 = vpack.c.bf16 %v1217, %v1216
      %v1266 = vpack.c.bf16 %v1219, %v1218
      %v1267 = vpack.c.bf16 %v1221, %v1220
      %v1268 = vpack.c.bf16 %v1223, %v1222
      %v1269 = vpack.c.bf16 %v1225, %v1224
      %v1270 = vpack.c.bf16 %v1227, %v1226
      %v1271 = vpack.c.bf16 %v1229, %v1228
      %v1272 = vpack.c.bf16 %v1231, %v1230
      %v1273 = vpack.c.bf16 %v1233, %v1232
      %v1274 = vpack.c.bf16 %v1235, %v1234
      %v1275 = vpack.c.bf16 %v1237, %v1236
      %v1276 = vpack.c.bf16 %v1239, %v1238
      %v1277 = vpack.c.bf16 %v1241, %v1240
      %v1278 = vpack.c.bf16 %v1243, %v1242
      %v1279 = vpack.c.bf16 %v1245, %v1244
      %v1280 = vpack.c.bf16 %v1247, %v1246
      %v1281 = vpack.c.bf16 %v1249, %v1248
      %v1282 = vld [vmem:[%s5] sm:$0xf]
      %v1283 = vld [vmem:[%s5 + $0x4] sm:$0xf]
      %v1284 = vld [vmem:[%s5 + $0x8] sm:$0xf]
      %v1285 = vld [vmem:[%s5 + $0xc] sm:$0xf]
      %v1286 = vld [vmem:[%s5 + $0x10] sm:$0xf]
      %v1287 = vld [vmem:[%s5 + $0x14] sm:$0xf]
      %v1288 = vld [vmem:[%s5 + $0x18] sm:$0xf]
      %v1289 = vld [vmem:[%s5 + $0x1c] sm:$0xf]
      %v1290 = vld [vmem:[%s5 + $0x20] sm:$0xf]
      %v1291 = vld [vmem:[%s5 + $0x24] sm:$0xf]
      %v1292 = vld [vmem:[%s5 + $0x28] sm:$0xf]
      %v1293 = vld [vmem:[%s5 + $0x2c] sm:$0xf]
      %v1294 = vld [vmem:[%s5 + $0x30] sm:$0xf]
      %v1295 = vld [vmem:[%s5 + $0x34] sm:$0xf]
      %v1296 = vld [vmem:[%s5 + $0x38] sm:$0xf]
      %v1297 = vld [vmem:[%s5 + $0x3c] sm:$0xf]
      %v1298 = vld [vmem:[%s6] sm:$0x1]
      %v1300 = vperm.slane %v1298, 0
      %v1318 = vunpack.c.l.b16 %v1282
      %v1319 = vunpack.c.l.b16 %v1283
      %v1320 = vunpack.c.l.b16 %v1284
      %v1321 = vunpack.c.l.b16 %v1285
      %v1322 = vunpack.c.l.b16 %v1286
      %v1323 = vunpack.c.l.b16 %v1287
      %v1324 = vunpack.c.l.b16 %v1288
      %v1325 = vunpack.c.l.b16 %v1289
      %v1326 = vunpack.c.l.b16 %v1290
      %v1327 = vunpack.c.l.b16 %v1291
      %v1328 = vunpack.c.l.b16 %v1292
      %v1329 = vunpack.c.l.b16 %v1293
      %v1330 = vunpack.c.l.b16 %v1294
      %v1331 = vunpack.c.l.b16 %v1295
      %v1332 = vunpack.c.l.b16 %v1296
      %v1333 = vunpack.c.l.b16 %v1297
      %v1334 = vpack.c.b16 %v1319, %v1318
      %v1335 = vpack.c.b16 %v1321, %v1320
      %v1336 = vpack.c.b16 %v1323, %v1322
      %v1337 = vpack.c.b16 %v1325, %v1324
      %v1338 = vpack.c.b16 %v1327, %v1326
      %v1339 = vpack.c.b16 %v1329, %v1328
      %v1340 = vpack.c.b16 %v1331, %v1330
      %v1341 = vpack.c.b16 %v1333, %v1332
      %1350 = vmatpush.bf16.msra.mxu0 %v1341
      %1351 = vmatpush.bf16.msra.mxu0 %v1340
      %1352 = vmatpush.bf16.msra.mxu0 %v1339
      %1353 = vmatpush.bf16.msra.mxu0 %v1338
      %1354 = vmatpush.bf16.msra.mxu0 %v1337
      %1355 = vmatpush.bf16.msra.mxu0 %v1336
      %1356 = vmatpush.bf16.msra.mxu0 %v1335
      %1357 = vmatpush.bf16.msra.mxu0 %v1334
      %1358 = vmatmul.bf16.gmra.mxu0 %v1250
      %v1359 = vpop.f32.mrf.mxu0
      %v1360 = vadd.f32 %v1300, %v1359
      %v1361 = vpop.f32.mrf.mxu0
      %v1362 = vadd.f32 %v1300, %v1361
      %1363 = vmatmul.bf16.gmra.mxu0 %v1251
      %v1364 = vpop.f32.mrf.mxu0
      %v1365 = vadd.f32 %v1300, %v1364
      %v1366 = vpop.f32.mrf.mxu0
      %v1367 = vadd.f32 %v1300, %v1366
      %1368 = vmatmul.bf16.gmra.mxu0 %v1252
      %v1369 = vpop.f32.mrf.mxu0
      %v1370 = vadd.f32 %v1300, %v1369
      %v1371 = vpop.f32.mrf.mxu0
      %v1372 = vadd.f32 %v1300, %v1371
      %1373 = vmatmul.bf16.gmra.mxu0 %v1253
      %v1374 = vpop.f32.mrf.mxu0
      %v1375 = vadd.f32 %v1300, %v1374
      %v1376 = vpop.f32.mrf.mxu0
      %v1377 = vadd.f32 %v1300, %v1376
      %1378 = vmatmul.bf16.gmra.mxu0 %v1254
      %v1379 = vpop.f32.mrf.mxu0
      %v1380 = vadd.f32 %v1300, %v1379
      %v1381 = vpop.f32.mrf.mxu0
      %v1382 = vadd.f32 %v1300, %v1381
      %1383 = vmatmul.bf16.gmra.mxu0 %v1255
      %v1384 = vpop.f32.mrf.mxu0
      %v1385 = vadd.f32 %v1300, %v1384
      %v1386 = vpop.f32.mrf.mxu0
      %v1387 = vadd.f32 %v1300, %v1386
      %1388 = vmatmul.bf16.gmra.mxu0 %v1256
      %v1389 = vpop.f32.mrf.mxu0
      %v1390 = vadd.f32 %v1300, %v1389
      %v1391 = vpop.f32.mrf.mxu0
      %v1392 = vadd.f32 %v1300, %v1391
      %1393 = vmatmul.bf16.gmra.mxu0 %v1257
      %v1394 = vpop.f32.mrf.mxu0
      %v1395 = vadd.f32 %v1300, %v1394
      %v1396 = vpop.f32.mrf.mxu0
      %v1397 = vadd.f32 %v1300, %v1396
      %1398 = vmatmul.bf16.gmra.mxu0 %v1258
      %v1399 = vpop.f32.mrf.mxu0
      %v1400 = vadd.f32 %v1300, %v1399
      %v1401 = vpop.f32.mrf.mxu0
      %v1402 = vadd.f32 %v1300, %v1401
      %1403 = vmatmul.bf16.gmra.mxu0 %v1259
      %v1404 = vpop.f32.mrf.mxu0
      %v1405 = vadd.f32 %v1300, %v1404
      %v1406 = vpop.f32.mrf.mxu0
      %v1407 = vadd.f32 %v1300, %v1406
      %1408 = vmatmul.bf16.gmra.mxu0 %v1260
      %v1409 = vpop.f32.mrf.mxu0
      %v1410 = vadd.f32 %v1300, %v1409
      %v1411 = vpop.f32.mrf.mxu0
      %v1412 = vadd.f32 %v1300, %v1411
      %1413 = vmatmul.bf16.gmra.mxu0 %v1261
      %v1414 = vpop.f32.mrf.mxu0
      %v1415 = vadd.f32 %v1300, %v1414
      %v1416 = vpop.f32.mrf.mxu0
      %v1417 = vadd.f32 %v1300, %v1416
      %1418 = vmatmul.bf16.gmra.mxu0 %v1262
      %v1419 = vpop.f32.mrf.mxu0
      %v1420 = vadd.f32 %v1300, %v1419
      %v1421 = vpop.f32.mrf.mxu0
      %v1422 = vadd.f32 %v1300, %v1421
      %1423 = vmatmul.bf16.gmra.mxu0 %v1263
      %v1424 = vpop.f32.mrf.mxu0
      %v1425 = vadd.f32 %v1300, %v1424
      %v1426 = vpop.f32.mrf.mxu0
      %v1427 = vadd.f32 %v1300, %v1426
      %1428 = vmatmul.bf16.gmra.mxu0 %v1264
      %v1429 = vpop.f32.mrf.mxu0
      %v1430 = vadd.f32 %v1300, %v1429
      %v1431 = vpop.f32.mrf.mxu0
      %v1432 = vadd.f32 %v1300, %v1431
      %1433 = vmatmul.bf16.gmra.mxu0 %v1265
      %v1434 = vpop.f32.mrf.mxu0
      %v1435 = vadd.f32 %v1300, %v1434
      %v1436 = vpop.f32.mrf.mxu0
      %v1437 = vadd.f32 %v1300, %v1436
      %1438 = vmatmul.bf16.gmra.mxu0 %v1266
      %v1439 = vpop.f32.mrf.mxu0
      %v1440 = vadd.f32 %v1300, %v1439
      %v1441 = vpop.f32.mrf.mxu0
      %v1442 = vadd.f32 %v1300, %v1441
      %1443 = vmatmul.bf16.gmra.mxu0 %v1267
      %v1444 = vpop.f32.mrf.mxu0
      %v1445 = vadd.f32 %v1300, %v1444
      %v1446 = vpop.f32.mrf.mxu0
      %v1447 = vadd.f32 %v1300, %v1446
      %1448 = vmatmul.bf16.gmra.mxu0 %v1268
      %v1449 = vpop.f32.mrf.mxu0
      %v1450 = vadd.f32 %v1300, %v1449
      %v1451 = vpop.f32.mrf.mxu0
      %v1452 = vadd.f32 %v1300, %v1451
      %1453 = vmatmul.bf16.gmra.mxu0 %v1269
      %v1454 = vpop.f32.mrf.mxu0
      %v1455 = vadd.f32 %v1300, %v1454
      %v1456 = vpop.f32.mrf.mxu0
      %v1457 = vadd.f32 %v1300, %v1456
      %1458 = vmatmul.bf16.gmra.mxu0 %v1270
      %v1459 = vpop.f32.mrf.mxu0
      %v1460 = vadd.f32 %v1300, %v1459
      %v1461 = vpop.f32.mrf.mxu0
      %v1462 = vadd.f32 %v1300, %v1461
      %1463 = vmatmul.bf16.gmra.mxu0 %v1271
      %v1464 = vpop.f32.mrf.mxu0
      %v1465 = vadd.f32 %v1300, %v1464
      %v1466 = vpop.f32.mrf.mxu0
      %v1467 = vadd.f32 %v1300, %v1466
      %1468 = vmatmul.bf16.gmra.mxu0 %v1272
      %v1469 = vpop.f32.mrf.mxu0
      %v1470 = vadd.f32 %v1300, %v1469
      %v1471 = vpop.f32.mrf.mxu0
      %v1472 = vadd.f32 %v1300, %v1471
      %1473 = vmatmul.bf16.gmra.mxu0 %v1273
      %v1474 = vpop.f32.mrf.mxu0
      %v1475 = vadd.f32 %v1300, %v1474
      %v1476 = vpop.f32.mrf.mxu0
      %v1477 = vadd.f32 %v1300, %v1476
      %1478 = vmatmul.bf16.gmra.mxu0 %v1274
      %v1479 = vpop.f32.mrf.mxu0
      %v1480 = vadd.f32 %v1300, %v1479
      %v1481 = vpop.f32.mrf.mxu0
      %v1482 = vadd.f32 %v1300, %v1481
      %1483 = vmatmul.bf16.gmra.mxu0 %v1275
      %v1484 = vpop.f32.mrf.mxu0
      %v1485 = vadd.f32 %v1300, %v1484
      %v1486 = vpop.f32.mrf.mxu0
      %v1487 = vadd.f32 %v1300, %v1486
      %1488 = vmatmul.bf16.gmra.mxu0 %v1276
      %v1489 = vpop.f32.mrf.mxu0
      %v1490 = vadd.f32 %v1300, %v1489
      %v1491 = vpop.f32.mrf.mxu0
      %v1492 = vadd.f32 %v1300, %v1491
      %1493 = vmatmul.bf16.gmra.mxu0 %v1277
      %v1494 = vpop.f32.mrf.mxu0
      %v1495 = vadd.f32 %v1300, %v1494
      %v1496 = vpop.f32.mrf.mxu0
      %v1497 = vadd.f32 %v1300, %v1496
      %1498 = vmatmul.bf16.gmra.mxu0 %v1278
      %v1499 = vpop.f32.mrf.mxu0
      %v1500 = vadd.f32 %v1300, %v1499
      %v1501 = vpop.f32.mrf.mxu0
      %v1502 = vadd.f32 %v1300, %v1501
      %1503 = vmatmul.bf16.gmra.mxu0 %v1279
      %v1504 = vpop.f32.mrf.mxu0
      %v1505 = vadd.f32 %v1300, %v1504
      %v1506 = vpop.f32.mrf.mxu0
      %v1507 = vadd.f32 %v1300, %v1506
      %1508 = vmatmul.bf16.gmra.mxu0 %v1280
      %v1509 = vpop.f32.mrf.mxu0
      %v1510 = vadd.f32 %v1300, %v1509
      %v1511 = vpop.f32.mrf.mxu0
      %v1512 = vadd.f32 %v1300, %v1511
      %1513 = vmatmul.bf16.gmra.mxu0 %v1281
      %v1514 = vpop.f32.mrf.mxu0
      %v1515 = vadd.f32 %v1300, %v1514
      %v1516 = vpop.f32.mrf.mxu0
      %v1517 = vadd.f32 %v1300, %v1516
      %1518 = vdwg.mxu0
      %v1519 = vmax.f32 %v1360, 0.0
      %v1520 = vmax.f32 %v1362, 0.0
      %v1521 = vmax.f32 %v1365, 0.0
      %v1522 = vmax.f32 %v1367, 0.0
      %v1523 = vmax.f32 %v1370, 0.0
      %v1524 = vmax.f32 %v1372, 0.0
      %v1525 = vmax.f32 %v1375, 0.0
      %v1526 = vmax.f32 %v1377, 0.0
      %v1527 = vmax.f32 %v1380, 0.0
      %v1528 = vmax.f32 %v1382, 0.0
      %v1529 = vmax.f32 %v1385, 0.0
      %v1530 = vmax.f32 %v1387, 0.0
      %v1531 = vmax.f32 %v1390, 0.0
      %v1532 = vmax.f32 %v1392, 0.0
      %v1533 = vmax.f32 %v1395, 0.0
      %v1534 = vmax.f32 %v1397, 0.0
      %v1535 = vmax.f32 %v1400, 0.0
      %v1536 = vmax.f32 %v1402, 0.0
      %v1537 = vmax.f32 %v1405, 0.0
      %v1538 = vmax.f32 %v1407, 0.0
      %v1539 = vmax.f32 %v1410, 0.0
      %v1540 = vmax.f32 %v1412, 0.0
      %v1541 = vmax.f32 %v1415, 0.0
      %v1542 = vmax.f32 %v1417, 0.0
      %v1543 = vmax.f32 %v1420, 0.0
      %v1544 = vmax.f32 %v1422, 0.0
      %v1545 = vmax.f32 %v1425, 0.0
      %v1546 = vmax.f32 %v1427, 0.0
      %v1547 = vmax.f32 %v1430, 0.0
      %v1548 = vmax.f32 %v1432, 0.0
      %v1549 = vmax.f32 %v1435, 0.0
      %v1550 = vmax.f32 %v1437, 0.0
      %v1551 = vmax.f32 %v1440, 0.0
      %v1552 = vmax.f32 %v1442, 0.0
      %v1553 = vmax.f32 %v1445, 0.0
      %v1554 = vmax.f32 %v1447, 0.0
      %v1555 = vmax.f32 %v1450, 0.0
      %v1556 = vmax.f32 %v1452, 0.0
      %v1557 = vmax.f32 %v1455, 0.0
      %v1558 = vmax.f32 %v1457, 0.0
      %v1559 = vmax.f32 %v1460, 0.0
      %v1560 = vmax.f32 %v1462, 0.0
      %v1561 = vmax.f32 %v1465, 0.0
      %v1562 = vmax.f32 %v1467, 0.0
      %v1563 = vmax.f32 %v1470, 0.0
      %v1564 = vmax.f32 %v1472, 0.0
      %v1565 = vmax.f32 %v1475, 0.0
      %v1566 = vmax.f32 %v1477, 0.0
      %v1567 = vmax.f32 %v1480, 0.0
      %v1568 = vmax.f32 %v1482, 0.0
      %v1569 = vmax.f32 %v1485, 0.0
      %v1570 = vmax.f32 %v1487, 0.0
      %v1571 = vmax.f32 %v1490, 0.0
      %v1572 = vmax.f32 %v1492, 0.0
      %v1573 = vmax.f32 %v1495, 0.0
      %v1574 = vmax.f32 %v1497, 0.0
      %v1575 = vmax.f32 %v1500, 0.0
      %v1576 = vmax.f32 %v1502, 0.0
      %v1577 = vmax.f32 %v1505, 0.0
      %v1578 = vmax.f32 %v1507, 0.0
      %v1579 = vmax.f32 %v1510, 0.0
      %v1580 = vmax.f32 %v1512, 0.0
      %v1581 = vmax.f32 %v1515, 0.0
      %v1582 = vmax.f32 %v1517, 0.0
      %v1583 = vpack.c.bf16 %v1520, %v1519
      %v1584 = vpack.c.bf16 %v1522, %v1521
      %v1585 = vpack.c.bf16 %v1524, %v1523
      %v1586 = vpack.c.bf16 %v1526, %v1525
      %v1587 = vpack.c.bf16 %v1528, %v1527
      %v1588 = vpack.c.bf16 %v1530, %v1529
      %v1589 = vpack.c.bf16 %v1532, %v1531
      %v1590 = vpack.c.bf16 %v1534, %v1533
      %v1591 = vpack.c.bf16 %v1536, %v1535
      %v1592 = vpack.c.bf16 %v1538, %v1537
      %v1593 = vpack.c.bf16 %v1540, %v1539
      %v1594 = vpack.c.bf16 %v1542, %v1541
      %v1595 = vpack.c.bf16 %v1544, %v1543
      %v1596 = vpack.c.bf16 %v1546, %v1545
      %v1597 = vpack.c.bf16 %v1548, %v1547
      %v1598 = vpack.c.bf16 %v1550, %v1549
      %v1599 = vpack.c.bf16 %v1552, %v1551
      %v1600 = vpack.c.bf16 %v1554, %v1553
      %v1601 = vpack.c.bf16 %v1556, %v1555
      %v1602 = vpack.c.bf16 %v1558, %v1557
      %v1603 = vpack.c.bf16 %v1560, %v1559
      %v1604 = vpack.c.bf16 %v1562, %v1561
      %v1605 = vpack.c.bf16 %v1564, %v1563
      %v1606 = vpack.c.bf16 %v1566, %v1565
      %v1607 = vpack.c.bf16 %v1568, %v1567
      %v1608 = vpack.c.bf16 %v1570, %v1569
      %v1609 = vpack.c.bf16 %v1572, %v1571
      %v1610 = vpack.c.bf16 %v1574, %v1573
      %v1611 = vpack.c.bf16 %v1576, %v1575
      %v1612 = vpack.c.bf16 %v1578, %v1577
      %v1613 = vpack.c.bf16 %v1580, %v1579
      %v1614 = vpack.c.bf16 %v1582, %v1581
      %v1615 = vld [vmem:[%s7] sm:$0xf]
      %v1616 = vld [vmem:[%s7 + $0x4] sm:$0xf]
      %v1617 = vld [vmem:[%s7 + $0x8] sm:$0xf]
      %v1618 = vld [vmem:[%s7 + $0xc] sm:$0xf]
      %v1619 = vld [vmem:[%s7 + $0x10] sm:$0xf]
      %v1620 = vld [vmem:[%s7 + $0x14] sm:$0xf]
      %v1621 = vld [vmem:[%s7 + $0x18] sm:$0xf]
      %v1622 = vld [vmem:[%s7 + $0x1c] sm:$0xf]
      %v1623 = vld [vmem:[%s7 + $0x20] sm:$0xf]
      %v1624 = vld [vmem:[%s7 + $0x24] sm:$0xf]
      %v1625 = vld [vmem:[%s7 + $0x28] sm:$0xf]
      %v1626 = vld [vmem:[%s7 + $0x2c] sm:$0xf]
      %v1627 = vld [vmem:[%s7 + $0x30] sm:$0xf]
      %v1628 = vld [vmem:[%s7 + $0x34] sm:$0xf]
      %v1629 = vld [vmem:[%s7 + $0x38] sm:$0xf]
      %v1630 = vld [vmem:[%s7 + $0x3c] sm:$0xf]
      %v1631 = vld [vmem:[%s8] sm:$0x1]
      %v1633 = vperm.slane %v1631, 0
      %v1651 = vunpack.c.l.b16 %v1615
      %v1652 = vunpack.c.l.b16 %v1616
      %v1653 = vunpack.c.l.b16 %v1617
      %v1654 = vunpack.c.l.b16 %v1618
      %v1655 = vunpack.c.l.b16 %v1619
      %v1656 = vunpack.c.l.b16 %v1620
      %v1657 = vunpack.c.l.b16 %v1621
      %v1658 = vunpack.c.l.b16 %v1622
      %v1659 = vunpack.c.l.b16 %v1623
      %v1660 = vunpack.c.l.b16 %v1624
      %v1661 = vunpack.c.l.b16 %v1625
      %v1662 = vunpack.c.l.b16 %v1626
      %v1663 = vunpack.c.l.b16 %v1627
      %v1664 = vunpack.c.l.b16 %v1628
      %v1665 = vunpack.c.l.b16 %v1629
      %v1666 = vunpack.c.l.b16 %v1630
      %v1667 = vpack.c.b16 %v1652, %v1651
      %v1668 = vpack.c.b16 %v1654, %v1653
      %v1669 = vpack.c.b16 %v1656, %v1655
      %v1670 = vpack.c.b16 %v1658, %v1657
      %v1671 = vpack.c.b16 %v1660, %v1659
      %v1672 = vpack.c.b16 %v1662, %v1661
      %v1673 = vpack.c.b16 %v1664, %v1663
      %v1674 = vpack.c.b16 %v1666, %v1665
      %1683 = vmatpush.bf16.msra.mxu0 %v1674
      %1684 = vmatpush.bf16.msra.mxu0 %v1673
      %1685 = vmatpush.bf16.msra.mxu0 %v1672
      %1686 = vmatpush.bf16.msra.mxu0 %v1671
      %1687 = vmatpush.bf16.msra.mxu0 %v1670
      %1688 = vmatpush.bf16.msra.mxu0 %v1669
      %1689 = vmatpush.bf16.msra.mxu0 %v1668
      %1690 = vmatpush.bf16.msra.mxu0 %v1667
      %1691 = vmatmul.bf16.gmra.mxu0 %v1583
      %v1692 = vpop.f32.mrf.mxu0
      %v1693 = vadd.f32 %v1633, %v1692
      %v1694 = vpop.f32.mrf.mxu0
      %v1695 = vadd.f32 %v1633, %v1694
      %1696 = vmatmul.bf16.gmra.mxu0 %v1584
      %v1697 = vpop.f32.mrf.mxu0
      %v1698 = vadd.f32 %v1633, %v1697
      %v1699 = vpop.f32.mrf.mxu0
      %v1700 = vadd.f32 %v1633, %v1699
      %1701 = vmatmul.bf16.gmra.mxu0 %v1585
      %v1702 = vpop.f32.mrf.mxu0
      %v1703 = vadd.f32 %v1633, %v1702
      %v1704 = vpop.f32.mrf.mxu0
      %v1705 = vadd.f32 %v1633, %v1704
      %1706 = vmatmul.bf16.gmra.mxu0 %v1586
      %v1707 = vpop.f32.mrf.mxu0
      %v1708 = vadd.f32 %v1633, %v1707
      %v1709 = vpop.f32.mrf.mxu0
      %v1710 = vadd.f32 %v1633, %v1709
      %1711 = vmatmul.bf16.gmra.mxu0 %v1587
      %v1712 = vpop.f32.mrf.mxu0
      %v1713 = vadd.f32 %v1633, %v1712
      %v1714 = vpop.f32.mrf.mxu0
      %v1715 = vadd.f32 %v1633, %v1714
      %1716 = vmatmul.bf16.gmra.mxu0 %v1588
      %v1717 = vpop.f32.mrf.mxu0
      %v1718 = vadd.f32 %v1633, %v1717
      %v1719 = vpop.f32.mrf.mxu0
      %v1720 = vadd.f32 %v1633, %v1719
      %1721 = vmatmul.bf16.gmra.mxu0 %v1589
      %v1722 = vpop.f32.mrf.mxu0
      %v1723 = vadd.f32 %v1633, %v1722
      %v1724 = vpop.f32.mrf.mxu0
      %v1725 = vadd.f32 %v1633, %v1724
      %1726 = vmatmul.bf16.gmra.mxu0 %v1590
      %v1727 = vpop.f32.mrf.mxu0
      %v1728 = vadd.f32 %v1633, %v1727
      %v1729 = vpop.f32.mrf.mxu0
      %v1730 = vadd.f32 %v1633, %v1729
      %1731 = vmatmul.bf16.gmra.mxu0 %v1591
      %v1732 = vpop.f32.mrf.mxu0
      %v1733 = vadd.f32 %v1633, %v1732
      %v1734 = vpop.f32.mrf.mxu0
      %v1735 = vadd.f32 %v1633, %v1734
      %1736 = vmatmul.bf16.gmra.mxu0 %v1592
      %v1737 = vpop.f32.mrf.mxu0
      %v1738 = vadd.f32 %v1633, %v1737
      %v1739 = vpop.f32.mrf.mxu0
      %v1740 = vadd.f32 %v1633, %v1739
      %1741 = vmatmul.bf16.gmra.mxu0 %v1593
      %v1742 = vpop.f32.mrf.mxu0
      %v1743 = vadd.f32 %v1633, %v1742
      %v1744 = vpop.f32.mrf.mxu0
      %v1745 = vadd.f32 %v1633, %v1744
      %1746 = vmatmul.bf16.gmra.mxu0 %v1594
      %v1747 = vpop.f32.mrf.mxu0
      %v1748 = vadd.f32 %v1633, %v1747
      %v1749 = vpop.f32.mrf.mxu0
      %v1750 = vadd.f32 %v1633, %v1749
      %1751 = vmatmul.bf16.gmra.mxu0 %v1595
      %v1752 = vpop.f32.mrf.mxu0
      %v1753 = vadd.f32 %v1633, %v1752
      %v1754 = vpop.f32.mrf.mxu0
      %v1755 = vadd.f32 %v1633, %v1754
      %1756 = vmatmul.bf16.gmra.mxu0 %v1596
      %v1757 = vpop.f32.mrf.mxu0
      %v1758 = vadd.f32 %v1633, %v1757
      %v1759 = vpop.f32.mrf.mxu0
      %v1760 = vadd.f32 %v1633, %v1759
      %1761 = vmatmul.bf16.gmra.mxu0 %v1597
      %v1762 = vpop.f32.mrf.mxu0
      %v1763 = vadd.f32 %v1633, %v1762
      %v1764 = vpop.f32.mrf.mxu0
      %v1765 = vadd.f32 %v1633, %v1764
      %1766 = vmatmul.bf16.gmra.mxu0 %v1598
      %v1767 = vpop.f32.mrf.mxu0
      %v1768 = vadd.f32 %v1633, %v1767
      %v1769 = vpop.f32.mrf.mxu0
      %v1770 = vadd.f32 %v1633, %v1769
      %1771 = vmatmul.bf16.gmra.mxu0 %v1599
      %v1772 = vpop.f32.mrf.mxu0
      %v1773 = vadd.f32 %v1633, %v1772
      %v1774 = vpop.f32.mrf.mxu0
      %v1775 = vadd.f32 %v1633, %v1774
      %1776 = vmatmul.bf16.gmra.mxu0 %v1600
      %v1777 = vpop.f32.mrf.mxu0
      %v1778 = vadd.f32 %v1633, %v1777
      %v1779 = vpop.f32.mrf.mxu0
      %v1780 = vadd.f32 %v1633, %v1779
      %1781 = vmatmul.bf16.gmra.mxu0 %v1601
      %v1782 = vpop.f32.mrf.mxu0
      %v1783 = vadd.f32 %v1633, %v1782
      %v1784 = vpop.f32.mrf.mxu0
      %v1785 = vadd.f32 %v1633, %v1784
      %1786 = vmatmul.bf16.gmra.mxu0 %v1602
      %v1787 = vpop.f32.mrf.mxu0
      %v1788 = vadd.f32 %v1633, %v1787
      %v1789 = vpop.f32.mrf.mxu0
      %v1790 = vadd.f32 %v1633, %v1789
      %1791 = vmatmul.bf16.gmra.mxu0 %v1603
      %v1792 = vpop.f32.mrf.mxu0
      %v1793 = vadd.f32 %v1633, %v1792
      %v1794 = vpop.f32.mrf.mxu0
      %v1795 = vadd.f32 %v1633, %v1794
      %1796 = vmatmul.bf16.gmra.mxu0 %v1604
      %v1797 = vpop.f32.mrf.mxu0
      %v1798 = vadd.f32 %v1633, %v1797
      %v1799 = vpop.f32.mrf.mxu0
      %v1800 = vadd.f32 %v1633, %v1799
      %1801 = vmatmul.bf16.gmra.mxu0 %v1605
      %v1802 = vpop.f32.mrf.mxu0
      %v1803 = vadd.f32 %v1633, %v1802
      %v1804 = vpop.f32.mrf.mxu0
      %v1805 = vadd.f32 %v1633, %v1804
      %1806 = vmatmul.bf16.gmra.mxu0 %v1606
      %v1807 = vpop.f32.mrf.mxu0
      %v1808 = vadd.f32 %v1633, %v1807
      %v1809 = vpop.f32.mrf.mxu0
      %v1810 = vadd.f32 %v1633, %v1809
      %1811 = vmatmul.bf16.gmra.mxu0 %v1607
      %v1812 = vpop.f32.mrf.mxu0
      %v1813 = vadd.f32 %v1633, %v1812
      %v1814 = vpop.f32.mrf.mxu0
      %v1815 = vadd.f32 %v1633, %v1814
      %1816 = vmatmul.bf16.gmra.mxu0 %v1608
      %v1817 = vpop.f32.mrf.mxu0
      %v1818 = vadd.f32 %v1633, %v1817
      %v1819 = vpop.f32.mrf.mxu0
      %v1820 = vadd.f32 %v1633, %v1819
      %1821 = vmatmul.bf16.gmra.mxu0 %v1609
      %v1822 = vpop.f32.mrf.mxu0
      %v1823 = vadd.f32 %v1633, %v1822
      %v1824 = vpop.f32.mrf.mxu0
      %v1825 = vadd.f32 %v1633, %v1824
      %1826 = vmatmul.bf16.gmra.mxu0 %v1610
      %v1827 = vpop.f32.mrf.mxu0
      %v1828 = vadd.f32 %v1633, %v1827
      %v1829 = vpop.f32.mrf.mxu0
      %v1830 = vadd.f32 %v1633, %v1829
      %1831 = vmatmul.bf16.gmra.mxu0 %v1611
      %v1832 = vpop.f32.mrf.mxu0
      %v1833 = vadd.f32 %v1633, %v1832
      %v1834 = vpop.f32.mrf.mxu0
      %v1835 = vadd.f32 %v1633, %v1834
      %1836 = vmatmul.bf16.gmra.mxu0 %v1612
      %v1837 = vpop.f32.mrf.mxu0
      %v1838 = vadd.f32 %v1633, %v1837
      %v1839 = vpop.f32.mrf.mxu0
      %v1840 = vadd.f32 %v1633, %v1839
      %1841 = vmatmul.bf16.gmra.mxu0 %v1613
      %v1842 = vpop.f32.mrf.mxu0
      %v1843 = vadd.f32 %v1633, %v1842
      %v1844 = vpop.f32.mrf.mxu0
      %v1845 = vadd.f32 %v1633, %v1844
      %1846 = vmatmul.bf16.gmra.mxu0 %v1614
      %v1847 = vpop.f32.mrf.mxu0
      %v1848 = vadd.f32 %v1633, %v1847
      %v1849 = vpop.f32.mrf.mxu0
      %v1850 = vadd.f32 %v1633, %v1849
      %1851 = vdwg.mxu0
      %v1852 = vmax.f32 %v1693, 0.0
      %v1853 = vmax.f32 %v1695, 0.0
      %v1854 = vmax.f32 %v1698, 0.0
      %v1855 = vmax.f32 %v1700, 0.0
      %v1856 = vmax.f32 %v1703, 0.0
      %v1857 = vmax.f32 %v1705, 0.0
      %v1858 = vmax.f32 %v1708, 0.0
      %v1859 = vmax.f32 %v1710, 0.0
      %v1860 = vmax.f32 %v1713, 0.0
      %v1861 = vmax.f32 %v1715, 0.0
      %v1862 = vmax.f32 %v1718, 0.0
      %v1863 = vmax.f32 %v1720, 0.0
      %v1864 = vmax.f32 %v1723, 0.0
      %v1865 = vmax.f32 %v1725, 0.0
      %v1866 = vmax.f32 %v1728, 0.0
      %v1867 = vmax.f32 %v1730, 0.0
      %v1868 = vmax.f32 %v1733, 0.0
      %v1869 = vmax.f32 %v1735, 0.0
      %v1870 = vmax.f32 %v1738, 0.0
      %v1871 = vmax.f32 %v1740, 0.0
      %v1872 = vmax.f32 %v1743, 0.0
      %v1873 = vmax.f32 %v1745, 0.0
      %v1874 = vmax.f32 %v1748, 0.0
      %v1875 = vmax.f32 %v1750, 0.0
      %v1876 = vmax.f32 %v1753, 0.0
      %v1877 = vmax.f32 %v1755, 0.0
      %v1878 = vmax.f32 %v1758, 0.0
      %v1879 = vmax.f32 %v1760, 0.0
      %v1880 = vmax.f32 %v1763, 0.0
      %v1881 = vmax.f32 %v1765, 0.0
      %v1882 = vmax.f32 %v1768, 0.0
      %v1883 = vmax.f32 %v1770, 0.0
      %v1884 = vmax.f32 %v1773, 0.0
      %v1885 = vmax.f32 %v1775, 0.0
      %v1886 = vmax.f32 %v1778, 0.0
      %v1887 = vmax.f32 %v1780, 0.0
      %v1888 = vmax.f32 %v1783, 0.0
      %v1889 = vmax.f32 %v1785, 0.0
      %v1890 = vmax.f32 %v1788, 0.0
      %v1891 = vmax.f32 %v1790, 0.0
      %v1892 = vmax.f32 %v1793, 0.0
      %v1893 = vmax.f32 %v1795, 0.0
      %v1894 = vmax.f32 %v1798, 0.0
      %v1895 = vmax.f32 %v1800, 0.0
      %v1896 = vmax.f32 %v1803, 0.0
      %v1897 = vmax.f32 %v1805, 0.0
      %v1898 = vmax.f32 %v1808, 0.0
      %v1899 = vmax.f32 %v1810, 0.0
      %v1900 = vmax.f32 %v1813, 0.0
      %v1901 = vmax.f32 %v1815, 0.0
      %v1902 = vmax.f32 %v1818, 0.0
      %v1903 = vmax.f32 %v1820, 0.0
      %v1904 = vmax.f32 %v1823, 0.0
      %v1905 = vmax.f32 %v1825, 0.0
      %v1906 = vmax.f32 %v1828, 0.0
      %v1907 = vmax.f32 %v1830, 0.0
      %v1908 = vmax.f32 %v1833, 0.0
      %v1909 = vmax.f32 %v1835, 0.0
      %v1910 = vmax.f32 %v1838, 0.0
      %v1911 = vmax.f32 %v1840, 0.0
      %v1912 = vmax.f32 %v1843, 0.0
      %v1913 = vmax.f32 %v1845, 0.0
      %v1914 = vmax.f32 %v1848, 0.0
      %v1915 = vmax.f32 %v1850, 0.0
      %v1916 = vpack.c.bf16 %v1852, %v1852
      %v1917 = vpack.c.bf16 %v1853, %v1853
      %v1918 = vpack.c.bf16 %v1854, %v1854
      %v1919 = vpack.c.bf16 %v1855, %v1855
      %v1920 = vpack.c.bf16 %v1856, %v1856
      %v1921 = vpack.c.bf16 %v1857, %v1857
      %v1922 = vpack.c.bf16 %v1858, %v1858
      %v1923 = vpack.c.bf16 %v1859, %v1859
      %v1924 = vpack.c.bf16 %v1860, %v1860
      %v1925 = vpack.c.bf16 %v1861, %v1861
      %v1926 = vpack.c.bf16 %v1862, %v1862
      %v1927 = vpack.c.bf16 %v1863, %v1863
      %v1928 = vpack.c.bf16 %v1864, %v1864
      %v1929 = vpack.c.bf16 %v1865, %v1865
      %v1930 = vpack.c.bf16 %v1866, %v1866
      %v1931 = vpack.c.bf16 %v1867, %v1867
      %v1932 = vpack.c.bf16 %v1868, %v1868
      %v1933 = vpack.c.bf16 %v1869, %v1869
      %v1934 = vpack.c.bf16 %v1870, %v1870
      %v1935 = vpack.c.bf16 %v1871, %v1871
      %v1936 = vpack.c.bf16 %v1872, %v1872
      %v1937 = vpack.c.bf16 %v1873, %v1873
      %v1938 = vpack.c.bf16 %v1874, %v1874
      %v1939 = vpack.c.bf16 %v1875, %v1875
      %v1940 = vpack.c.bf16 %v1876, %v1876
      %v1941 = vpack.c.bf16 %v1877, %v1877
      %v1942 = vpack.c.bf16 %v1878, %v1878
      %v1943 = vpack.c.bf16 %v1879, %v1879
      %v1944 = vpack.c.bf16 %v1880, %v1880
      %v1945 = vpack.c.bf16 %v1881, %v1881
      %v1946 = vpack.c.bf16 %v1882, %v1882
      %v1947 = vpack.c.bf16 %v1883, %v1883
      %v1948 = vpack.c.bf16 %v1884, %v1884
      %v1949 = vpack.c.bf16 %v1885, %v1885
      %v1950 = vpack.c.bf16 %v1886, %v1886
      %v1951 = vpack.c.bf16 %v1887, %v1887
      %v1952 = vpack.c.bf16 %v1888, %v1888
      %v1953 = vpack.c.bf16 %v1889, %v1889
      %v1954 = vpack.c.bf16 %v1890, %v1890
      %v1955 = vpack.c.bf16 %v1891, %v1891
      %v1956 = vpack.c.bf16 %v1892, %v1892
      %v1957 = vpack.c.bf16 %v1893, %v1893
      %v1958 = vpack.c.bf16 %v1894, %v1894
      %v1959 = vpack.c.bf16 %v1895, %v1895
      %v1960 = vpack.c.bf16 %v1896, %v1896
      %v1961 = vpack.c.bf16 %v1897, %v1897
      %v1962 = vpack.c.bf16 %v1898, %v1898
      %v1963 = vpack.c.bf16 %v1899, %v1899
      %v1964 = vpack.c.bf16 %v1900, %v1900
      %v1965 = vpack.c.bf16 %v1901, %v1901
      %v1966 = vpack.c.bf16 %v1902, %v1902
      %v1967 = vpack.c.bf16 %v1903, %v1903
      %v1968 = vpack.c.bf16 %v1904, %v1904
      %v1969 = vpack.c.bf16 %v1905, %v1905
      %v1970 = vpack.c.bf16 %v1906, %v1906
      %v1971 = vpack.c.bf16 %v1907, %v1907
      %v1972 = vpack.c.bf16 %v1908, %v1908
      %v1973 = vpack.c.bf16 %v1909, %v1909
      %v1974 = vpack.c.bf16 %v1910, %v1910
      %v1975 = vpack.c.bf16 %v1911, %v1911
      %v1976 = vpack.c.bf16 %v1912, %v1912
      %v1977 = vpack.c.bf16 %v1913, %v1913
      %v1978 = vpack.c.bf16 %v1914, %v1914
      %v1979 = vpack.c.bf16 %v1915, %v1915
      %1980 = vst [vmem:[%s334] sm:$0xf] %v1916
      %1981 = vst [vmem:[%s334 + $0x4] sm:$0xf] %v1917
      %1982 = vst [vmem:[%s334 + $0x8] sm:$0xf] %v1918
      %1983 = vst [vmem:[%s334 + $0xc] sm:$0xf] %v1919
      %1984 = vst [vmem:[%s334 + $0x10] sm:$0xf] %v1920
      %1985 = vst [vmem:[%s334 + $0x14] sm:$0xf] %v1921
      %1986 = vst [vmem:[%s334 + $0x18] sm:$0xf] %v1922
      %1987 = vst [vmem:[%s334 + $0x1c] sm:$0xf] %v1923
      %1988 = vst [vmem:[%s334 + $0x20] sm:$0xf] %v1924
      %1989 = vst [vmem:[%s334 + $0x24] sm:$0xf] %v1925
      %1990 = vst [vmem:[%s334 + $0x28] sm:$0xf] %v1926
      %1991 = vst [vmem:[%s334 + $0x2c] sm:$0xf] %v1927
      %1992 = vst [vmem:[%s334 + $0x30] sm:$0xf] %v1928
      %1993 = vst [vmem:[%s334 + $0x34] sm:$0xf] %v1929
      %1994 = vst [vmem:[%s334 + $0x38] sm:$0xf] %v1930
      %1995 = vst [vmem:[%s334 + $0x3c] sm:$0xf] %v1931
      %1996 = vst [vmem:[%s334 + $0x40] sm:$0xf] %v1932
      %1997 = vst [vmem:[%s334 + $0x44] sm:$0xf] %v1933
      %1998 = vst [vmem:[%s334 + $0x48] sm:$0xf] %v1934
      %1999 = vst [vmem:[%s334 + $0x4c] sm:$0xf] %v1935
      %2000 = vst [vmem:[%s334 + $0x50] sm:$0xf] %v1936
      %2001 = vst [vmem:[%s334 + $0x54] sm:$0xf] %v1937
      %2002 = vst [vmem:[%s334 + $0x58] sm:$0xf] %v1938
      %2003 = vst [vmem:[%s334 + $0x5c] sm:$0xf] %v1939
      %2004 = vst [vmem:[%s334 + $0x60] sm:$0xf] %v1940
      %2005 = vst [vmem:[%s334 + $0x64] sm:$0xf] %v1941
      %2006 = vst [vmem:[%s334 + $0x68] sm:$0xf] %v1942
      %2007 = vst [vmem:[%s334 + $0x6c] sm:$0xf] %v1943
      %2008 = vst [vmem:[%s334 + $0x70] sm:$0xf] %v1944
      %2009 = vst [vmem:[%s334 + $0x74] sm:$0xf] %v1945
      %2010 = vst [vmem:[%s334 + $0x78] sm:$0xf] %v1946
      %2011 = vst [vmem:[%s334 + $0x7c] sm:$0xf] %v1947
      %2012 = vst [vmem:[%s334 + $0x80] sm:$0xf] %v1948
      %2013 = vst [vmem:[%s334 + $0x84] sm:$0xf] %v1949
      %2014 = vst [vmem:[%s334 + $0x88] sm:$0xf] %v1950
      %2015 = vst [vmem:[%s334 + $0x8c] sm:$0xf] %v1951
      %2016 = vst [vmem:[%s334 + $0x90] sm:$0xf] %v1952
      %2017 = vst [vmem:[%s334 + $0x94] sm:$0xf] %v1953
      %2018 = vst [vmem:[%s334 + $0x98] sm:$0xf] %v1954
      %2019 = vst [vmem:[%s334 + $0x9c] sm:$0xf] %v1955
      %2020 = vst [vmem:[%s334 + $0xa0] sm:$0xf] %v1956
      %2021 = vst [vmem:[%s334 + $0xa4] sm:$0xf] %v1957
      %2022 = vst [vmem:[%s334 + $0xa8] sm:$0xf] %v1958
      %2023 = vst [vmem:[%s334 + $0xac] sm:$0xf] %v1959
      %2024 = vst [vmem:[%s334 + $0xb0] sm:$0xf] %v1960
      %2025 = vst [vmem:[%s334 + $0xb4] sm:$0xf] %v1961
      %2026 = vst [vmem:[%s334 + $0xb8] sm:$0xf] %v1962
      %2027 = vst [vmem:[%s334 + $0xbc] sm:$0xf] %v1963
      %2028 = vst [vmem:[%s334 + $0xc0] sm:$0xf] %v1964
      %2029 = vst [vmem:[%s334 + $0xc4] sm:$0xf] %v1965
      %2030 = vst [vmem:[%s334 + $0xc8] sm:$0xf] %v1966
      %2031 = vst [vmem:[%s334 + $0xcc] sm:$0xf] %v1967
      %2032 = vst [vmem:[%s334 + $0xd0] sm:$0xf] %v1968
      %2033 = vst [vmem:[%s334 + $0xd4] sm:$0xf] %v1969
      %2034 = vst [vmem:[%s334 + $0xd8] sm:$0xf] %v1970
      %2035 = vst [vmem:[%s334 + $0xdc] sm:$0xf] %v1971
      %2036 = vst [vmem:[%s334 + $0xe0] sm:$0xf] %v1972
      %2037 = vst [vmem:[%s334 + $0xe4] sm:$0xf] %v1973
      %2038 = vst [vmem:[%s334 + $0xe8] sm:$0xf] %v1974
      %2039 = vst [vmem:[%s334 + $0xec] sm:$0xf] %v1975
      %2040 = vst [vmem:[%s334 + $0xf0] sm:$0xf] %v1976
      %2041 = vst [vmem:[%s334 + $0xf4] sm:$0xf] %v1977
      %2042 = vst [vmem:[%s334 + $0xf8] sm:$0xf] %v1978
      %2043 = vst [vmem:[%s334 + $0xfc] sm:$0xf] %v1979
      %s2044 = smul.u32 64, %s20
      %p2045 = scmp.lt.s32.totalorder %s2044, 127
      %s2046 = scalar_select %p2045, %s2044, 127
      %s2047 = smul.addr %s2046, 4
      %s2048 = scalar_lea.vmem %s9, %s2047
      // Predicated region
      $region57: #{atom_embedding_forward.1} parent=55 // pred_check
        %p2049 = pneg %p232
      $region58: #{atom_embedding_forward.1} parent=55 // pred_check_branch
        %2051 = sbr.rel (%p2049) target = $region60
      $region59: #{atom_embedding_forward.1} parent=55 // pred_region
        %s2052 = smul.u32 64, %s20
      $region60: #{atom_embedding_forward.1} parent=55 // pred_fallthru
        _
    $region56: #{atom_embedding_forward.1} parent=5 // pred_fallthru
      _
    %p2053 = scmp.le.s32.totalorder 2, %s15
    // Predicated region
    $region61: #{atom_embedding_forward.1} parent=5 // pred_check
      %p2054 = pneg %p2053
    $region62: #{atom_embedding_forward.1} parent=5 // pred_check_branch
      %2056 = sbr.rel (%p2054) target = $region64
    $region63: #{atom_embedding_forward.1} parent=5 // pred_region
      %s2057 = ssub.s32 %s15, 2
      // Predicated region
      $region65: #{atom_embedding_forward.1} parent=63 // pred_check
        %p2058 = pneg %p238
      $region66: #{atom_embedding_forward.1} parent=63 // pred_check_branch
        %2060 = sbr.rel (%p2058) target = $region68
      $region67: #{atom_embedding_forward.1} parent=63 // pred_region
        %s2061 = smul.u32 64, %s21
        %p2062 = scmp.lt.s32.totalorder %s2061, 127
        %s2063 = scalar_select %p2062, %s2061, 127
        %s2064 = smul.addr %s2063, 4
        %s2065 = scalar_lea.vmem %s9, %s2064
      $region68: #{atom_embedding_forward.1} parent=63 // pred_fallthru
        _
    $region64: #{atom_embedding_forward.1} parent=5 // pred_fallthru
      _
  $region6: #{atom_embedding_forward.1} parent=0 // loop_footer
    %s19 = sadd.s32 1, %s15
  $region7: #{atom_embedding_forward.1} parent=0 // loop_footer_branch
    %14 = sbr.rel target = $region3
  $region8: #{atom_embedding_forward.1} parent=0 // loop_exit
    _

</llo_original>
